<compile_context>
chip_gen: v6e
topology: v6e:2x2x1
jax: 0.10.0
libtpu: 0.0.40
codegen_flags: <defaults>
</compile_context>

<pallas_src>
import functools
import math

import jax
import jax.numpy as jnp
from jax.experimental import pallas as pl
from jax.experimental.pallas import tpu as pltpu


# ---------------------------------------------------------------------------
# Pallas kernel: fused bidirectional LSTM recurrence + mean pool + linear
# ---------------------------------------------------------------------------
def textrnn_kernel(x_ref, len_ref, mask_ref, wih_ref, whh_ref, b_ref,
                   wlin_ref, blin_ref, out_ref, *, T, BB, H):
    D2 = x_ref.shape[-1]          # 2 * D  (fwd-time features | rev-time features)
    H2 = 2 * H                    # packed state width [dir_f | dir_b]

    # Hoisted, fused input projection for BOTH directions: one matmul against
    # the block-diagonal gate-interleaved Wih_cat, one bias add.
    x_all = x_ref[...].reshape(T * BB, D2)                       # (T*BB, 2D) bf16
    xw = (jnp.dot(x_all, wih_ref[...],
                  preferred_element_type=jnp.float32)
          + b_ref[...])                                          # (T*BB, 8H) f32

    # Hoisted validity masks (forward half: t < len ; backward half: T-1-t < len)
    valid_all = mask_ref[...] != 0.0                             # (T, BB, 2H) bool

    whh = whh_ref[...]                                           # (2H, 8H) bf16

    h = jnp.zeros((BB, H2), jnp.float32)
    c = jnp.zeros((BB, H2), jnp.float32)
    s = jnp.zeros((BB, H2), jnp.float32)

    # Fully unrolled fused recurrence. T is small and static. Gate column
    # layout (pre-built in the wrapper): [i_f,i_b, f_f,f_b, o_f,o_b, g_f,g_b].
    for t in range(T):
        gates = xw[t * BB:(t + 1) * BB, :] + jnp.dot(
            h.astype(jnp.bfloat16), whh, preferred_element_type=jnp.float32)

        sig = jax.nn.sigmoid(gates[:, :3 * H2])                  # i,f,o (both dirs)
        g_g = jnp.tanh(gates[:, 3 * H2:])                        # g     (both dirs)
        i_g = sig[:, 0 * H2:1 * H2]
        f_g = sig[:, 1 * H2:2 * H2]
        o_g = sig[:, 2 * H2:3 * H2]

        c_new = f_g * c + i_g * g_g
        h_new = o_g * jnp.tanh(c_new)

        # Packed-sequence semantics via selects: state only advances on valid
        # steps (h,c start at 0 so the backward direction effectively begins
        # at the last valid token). Padded steps contribute nothing to sums.
        valid = valid_all[t]                                     # (BB, 2H)
        h = jnp.where(valid, h_new, h)
        c = jnp.where(valid, c_new, c)
        s = s + jnp.where(valid, h_new, 0.0)

    # mean pool: out.sum(dim=1) / text_len  (guard len==0 for padded rows)
    inv_len = pl.reciprocal(
        jnp.maximum(len_ref[...].astype(jnp.float32), 1.0), approx=True)  # (BB,1)
    pooled = (s * inv_len).astype(jnp.bfloat16)                  # (BB, 2H)

    # classifier: single matmul, lane-dense (128-wide, zero-padded) output.
    out_ref[...] = (jnp.dot(pooled, wlin_ref[...],
                            preferred_element_type=jnp.float32)
                    + blin_ref[...])


# ---------------------------------------------------------------------------
# Wrapper: embedding gathers + layout / dtype prep in plain JAX (glue)
# ---------------------------------------------------------------------------
def _reorder_gates(w):
    # PyTorch gate order [i, f, g, o] -> [i, f, o, g] so the three sigmoids
    # apply to one contiguous slice of the packed gates.
    i, f, g, o = jnp.split(w, 4, axis=-1)
    return jnp.concatenate([i, f, o, g], axis=-1)


def _interleave_dirs(wf, wb, H):
    # (K, 4H) fwd + (K, 4H) bwd (gate order [i,f,o,g]) ->
    # (K, 8H) with columns [i_f,i_b, f_f,f_b, o_f,o_b, g_f,g_b].
    K = wf.shape[0]
    wf4 = wf.reshape(K, 4, H)
    wb4 = wb.reshape(K, 4, H)
    return jnp.stack([wf4, wb4], axis=2).reshape(K, 8 * H)


def textrnn_forward(word, word_pos, params):
    # Dropout is identity in eval mode.
    word_emb = params["word_embed"][word]                   # (B, T, WD)
    pos_emb = params["pos_embed"][word_pos]                 # (B, T, PD)
    feat = jnp.concatenate([word_emb, pos_emb], axis=-1)    # (B, T, D)

    B, T = word.shape
    D = feat.shape[-1]
    H = params["whh_f"].shape[0]
    C = params["w_lin"].shape[1]

    text_len = jnp.sum((word != 0).astype(jnp.int32), axis=-1)   # (B,)

    # Batch padding (multiple of 16 for dense bf16 sublanes) and batch block.
    BB_MAX = 256
    if B <= BB_MAX:
        BP = max(16, ((B + 15) // 16) * 16)
        BB = BP
    else:
        BP = ((B + BB_MAX - 1) // BB_MAX) * BB_MAX
        BB = BB_MAX
    pad = BP - B

    feat_p = jnp.pad(feat, ((0, pad), (0, 0), (0, 0)))
    lens_p = jnp.pad(text_len, ((0, pad),)).astype(jnp.int32)        # (BP,)

    # time-major; lane-concat forward-time and reversed-time features so one
    # block-diagonal projection serves both directions.
    feat_tm = jnp.transpose(feat_p, (1, 0, 2))                       # (T, BP, D)
    x_cat = jnp.concatenate([feat_tm, feat_tm[::-1]],
                            axis=-1).astype(jnp.bfloat16)            # (T, BP, 2D)

    # Hoisted validity mask: fwd half gated by t < len, bwd half by T-1-t < len.
    t_idx = jnp.arange(T, dtype=jnp.int32)
    vf = t_idx[:, None] < lens_p[None, :]                            # (T, BP)
    vb = (T - 1 - t_idx)[:, None] < lens_p[None, :]                  # (T, BP)
    mask = jnp.concatenate(
        [jnp.broadcast_to(vf[:, :, None], (T, BP, H)),
         jnp.broadcast_to(vb[:, :, None], (T, BP, H))],
        axis=-1).astype(jnp.float32)                                 # (T, BP, 2H)

    lens_2d = lens_p.reshape(BP, 1)

    # gate reorder + direction interleave + bf16 cast for MXU operands
    wih_f = _reorder_gates(params["wih_f"])
    wih_b = _reorder_gates(params["wih_b"])
    whh_f = _reorder_gates(params["whh_f"])
    whh_b = _reorder_gates(params["whh_b"])
    b_f = _reorder_gates(params["b_f"])
    b_b = _reorder_gates(params["b_b"])

    z_ih = jnp.zeros_like(wih_f)
    z_hh = jnp.zeros_like(whh_f)
    wih_cat = jnp.concatenate(
        [_interleave_dirs(wih_f, z_ih, H),
         _interleave_dirs(z_ih, wih_b, H)], axis=0).astype(jnp.bfloat16)  # (2D, 8H)
    whh_cat = jnp.concatenate(
        [_interleave_dirs(whh_f, z_hh, H),
         _interleave_dirs(z_hh, whh_b, H)], axis=0).astype(jnp.bfloat16)  # (2H, 8H)
    b_cat = _interleave_dirs(b_f, b_b, H).astype(jnp.float32)             # (1, 8H)

    # classifier padded to a lane-dense 128-wide output (slice [:, :C] after).
    CP = ((C + 127) // 128) * 128
    wlin_p = (jnp.zeros((2 * H, CP), jnp.float32)
              .at[:, :C].set(params["w_lin"]).astype(jnp.bfloat16))
    blin_p = jnp.zeros((1, CP), jnp.float32).at[:, :C].set(params["b_lin"])

    kernel = functools.partial(textrnn_kernel, T=T, BB=BB, H=H)
    out_p = pl.pallas_call(
        kernel,
        out_shape=jax.ShapeDtypeStruct((BP, CP), jnp.float32),
        grid=(BP // BB,),
        in_specs=[
            pl.BlockSpec((T, BB, 2 * D), lambda i: (0, i, 0)),   # x_cat
            pl.BlockSpec((BB, 1), lambda i: (i, 0)),             # lens
            pl.BlockSpec((T, BB, 2 * H), lambda i: (0, i, 0)),   # mask
            pl.BlockSpec((2 * D, 8 * H), lambda i: (0, 0)),      # Wih_cat
            pl.BlockSpec((2 * H, 8 * H), lambda i: (0, 0)),      # Whh_cat
            pl.BlockSpec((1, 8 * H), lambda i: (0, 0)),          # bias
            pl.BlockSpec((2 * H, CP), lambda i: (0, 0)),         # Wlin
            pl.BlockSpec((1, CP), lambda i: (0, 0)),             # b_lin
        ],
        out_specs=pl.BlockSpec((BB, CP), lambda i: (i, 0)),
        compiler_params=pltpu.CompilerParams(
            dimension_semantics=("parallel",)),
    )(x_cat, lens_2d, mask, wih_cat, whh_cat, b_cat, wlin_p, blin_p)
    return out_p[:B, :C]


# ---------------------------------------------------------------------------
# Deterministic parameter construction (PyTorch layout: gate order i,f,g,o)
# ---------------------------------------------------------------------------
def make_params(key, WN, WD, PN, PD, HD, C):
    D = WD + PD
    ks = jax.random.split(key, 10)

    def u(k, shape, scale):
        return jax.random.uniform(k, shape, jnp.float32, -scale, scale)

    s_rnn = 1.0 / math.sqrt(HD)
    s_lin = 1.0 / math.sqrt(2 * HD)

    params = {
        "word_embed": u(ks[0], (WN, WD), 0.5).at[0].set(0.0),  # padding_idx=0
        "pos_embed":  u(ks[1], (PN, PD), 0.5).at[0].set(0.0),  # padding_idx=0
        # forward direction LSTM (b = b_ih + b_hh, merged)
        "wih_f": u(ks[2], (D, 4 * HD), s_rnn),
        "whh_f": u(ks[3], (HD, 4 * HD), s_rnn),
        "b_f":   u(ks[4], (1, 4 * HD), s_rnn),
        # backward direction LSTM
        "wih_b": u(ks[5], (D, 4 * HD), s_rnn),
        "whh_b": u(ks[6], (HD, 4 * HD), s_rnn),
        "b_b":   u(ks[7], (1, 4 * HD), s_rnn),
        # classifier
        "w_lin": u(ks[8], (2 * HD, C), s_lin),
        "b_lin": u(ks[9], (1, C), s_lin),
    }
    return params


if __name__ == "__main__":
    # Small config consistent with the module's __init__.
    B, T = 2, 8                  # batch, seq (word_maxlen = 8)
    WN, WD = 32, 96              # embedding_matrix shape
    PN, PD = T + 1, 32           # position embedding (word_maxlen + 1, position_dim)
    HD = 32                      # hidden_dim
    C = 4                        # num_classes
    # feature dim D = WD + PD = 128

    key = jax.random.PRNGKey(0)
    kp, kw = jax.random.split(key)
    params = make_params(kp, WN, WD, PN, PD, HD, C)

    # word ids: nonzero in valid region, 0-padded beyond per-sequence length.
    lengths = jnp.array([8, 5], dtype=jnp.int32)
    word = jax.random.randint(kw, (B, T), 1, WN, dtype=jnp.int32)
    valid = (jnp.arange(T)[None, :] < lengths[:, None])
    word = jnp.where(valid, word, 0)
    # positions 1..T for valid tokens, 0 (padding_idx) elsewhere.
    word_pos = jnp.where(valid, jnp.arange(1, T + 1, dtype=jnp.int32)[None, :], 0)

    out = jax.jit(textrnn_forward)(word, word_pos, params)
    out = jax.block_until_ready(out)

    assert out.shape == (B, C), out.shape
    assert bool(jnp.all(jnp.isfinite(out)))
    print("KERNEL_OK")
</pallas_src>

<mosaic_0001>
module attributes {stable_mosaic.version = 11 : i64} {
  func.func @textrnn_kernel(%arg0: i32, %arg1: memref<8x16x256xbf16, #tpu.memory_space<vmem>>, %arg2: memref<16x1xi32, #tpu.memory_space<vmem>>, %arg3: memref<8x16x64xf32, #tpu.memory_space<vmem>>, %arg4: memref<256x256xbf16, #tpu.memory_space<vmem>>, %arg5: memref<64x256xbf16, #tpu.memory_space<vmem>>, %arg6: memref<1x256xf32, #tpu.memory_space<vmem>>, %arg7: memref<64x128xbf16, #tpu.memory_space<vmem>>, %arg8: memref<1x128xf32, #tpu.memory_space<vmem>>, %arg9: memref<16x128xf32, #tpu.memory_space<vmem>>) attributes {dimension_semantics = [#tpu.dimension_semantics<parallel>], iteration_bounds = array<i64: 1>, scalar_prefetch = 0 : i64, scratch_operands = 0 : i64, tpu.core_type = #tpu.core_type<tc>, window_params = [{transform_indices = @transform_0, window_bounds = array<i64: 8, 16, 256>}, {transform_indices = @transform_1, window_bounds = array<i64: 16, 1>}, {transform_indices = @transform_2, window_bounds = array<i64: 8, 16, 64>}, {pipeline_mode = #tpu.pipeline_mode<synchronous>, transform_indices = @transform_3, window_bounds = array<i64: 256, 256>}, {pipeline_mode = #tpu.pipeline_mode<synchronous>, transform_indices = @transform_4, window_bounds = array<i64: 64, 256>}, {pipeline_mode = #tpu.pipeline_mode<synchronous>, transform_indices = @transform_5, window_bounds = array<i64: 1, 256>}, {pipeline_mode = #tpu.pipeline_mode<synchronous>, transform_indices = @transform_6, window_bounds = array<i64: 64, 128>}, {pipeline_mode = #tpu.pipeline_mode<synchronous>, transform_indices = @transform_7, window_bounds = array<i64: 1, 128>}, {transform_indices = @transform_8, window_bounds = array<i64: 16, 128>}]} {
    %c0 = arith.constant 0 : index
    %c0_0 = arith.constant 0 : index
    %c0_1 = arith.constant 0 : index
    %0 = vector.load %arg1[%c0, %c0_0, %c0_1] : memref<8x16x256xbf16, #tpu.memory_space<vmem>>, vector<8x16x256xbf16>
    %1 = vector.shape_cast %0 : vector<8x16x256xbf16> to vector<128x256xbf16>
    %c0_2 = arith.constant 0 : index
    %c0_3 = arith.constant 0 : index
    %2 = vector.load %arg4[%c0_2, %c0_3] : memref<256x256xbf16, #tpu.memory_space<vmem>>, vector<256x256xbf16>
    %cst = arith.constant dense<0.000000e+00> : vector<128x256xf32>
    %3 = tpu.matmul %1, %2, %cst {dimension_numbers = #tpu.dot_dimension_numbers<[1], [0], [0], [1], [0, 0, 1, 1], [], []>} : vector<128x256xbf16>, vector<256x256xbf16>, vector<128x256xf32> -> vector<128x256xf32>
    %c0_4 = arith.constant 0 : index
    %c0_5 = arith.constant 0 : index
    %4 = vector.load %arg6[%c0_4, %c0_5] : memref<1x256xf32, #tpu.memory_space<vmem>>, vector<1x256xf32>
    %5 = vector.broadcast %4 : vector<1x256xf32> to vector<128x256xf32>
    %6 = arith.addf %3, %5 : vector<128x256xf32>
    %c0_6 = arith.constant 0 : index
    %c0_7 = arith.constant 0 : index
    %c0_8 = arith.constant 0 : index
    %7 = vector.load %arg3[%c0_6, %c0_7, %c0_8] : memref<8x16x64xf32, #tpu.memory_space<vmem>>, vector<8x16x64xf32>
    %cst_9 = arith.constant 0.000000e+00 : f32
    %8 = vector.broadcast %cst_9 : f32 to vector<8x16x64xf32>
    %9 = arith.cmpf one, %7, %8 : vector<8x16x64xf32>
    %c0_10 = arith.constant 0 : index
    %c0_11 = arith.constant 0 : index
    %10 = vector.load %arg5[%c0_10, %c0_11] : memref<64x256xbf16, #tpu.memory_space<vmem>>, vector<64x256xbf16>
    %cst_12 = arith.constant 0.000000e+00 : f32
    %11 = vector.broadcast %cst_12 : f32 to vector<16x64xf32>
    %cst_13 = arith.constant 0.000000e+00 : f32
    %12 = vector.broadcast %cst_13 : f32 to vector<16x64xf32>
    %cst_14 = arith.constant 0.000000e+00 : f32
    %13 = vector.broadcast %cst_14 : f32 to vector<16x64xf32>
    %14 = vector.extract_strided_slice %6 {offsets = [0, 0], sizes = [16, 256], strides = [1, 1]} : vector<128x256xf32> to vector<16x256xf32>
    %15 = arith.truncf %11 : vector<16x64xf32> to vector<16x64xbf16>
    %cst_15 = arith.constant dense<0.000000e+00> : vector<16x256xf32>
    %16 = tpu.matmul %15, %10, %cst_15 {dimension_numbers = #tpu.dot_dimension_numbers<[1], [0], [0], [1], [0, 0, 1, 1], [], []>} : vector<16x64xbf16>, vector<64x256xbf16>, vector<16x256xf32> -> vector<16x256xf32>
    %17 = arith.addf %14, %16 : vector<16x256xf32>
    %18 = vector.extract_strided_slice %17 {offsets = [0, 0], sizes = [16, 192], strides = [1, 1]} : vector<16x256xf32> to vector<16x192xf32>
    %19 = arith.negf %18 : vector<16x192xf32>
    %20 = math.exp %19 : vector<16x192xf32>
    %cst_16 = arith.constant 1.000000e+00 : f32
    %21 = vector.broadcast %cst_16 : f32 to vector<16x192xf32>
    %22 = arith.addf %21, %20 : vector<16x192xf32>
    %23 = arith.divf %21, %22 : vector<16x192xf32>
    %24 = vector.extract_strided_slice %17 {offsets = [0, 192], sizes = [16, 64], strides = [1, 1]} : vector<16x256xf32> to vector<16x64xf32>
    %25 = math.tanh %24 : vector<16x64xf32>
    %26 = vector.extract_strided_slice %23 {offsets = [0, 0], sizes = [16, 64], strides = [1, 1]} : vector<16x192xf32> to vector<16x64xf32>
    %27 = vector.extract_strided_slice %23 {offsets = [0, 64], sizes = [16, 64], strides = [1, 1]} : vector<16x192xf32> to vector<16x64xf32>
    %28 = vector.extract_strided_slice %23 {offsets = [0, 128], sizes = [16, 64], strides = [1, 1]} : vector<16x192xf32> to vector<16x64xf32>
    %29 = arith.mulf %27, %12 : vector<16x64xf32>
    %30 = arith.mulf %26, %25 : vector<16x64xf32>
    %31 = arith.addf %29, %30 : vector<16x64xf32>
    %32 = math.tanh %31 : vector<16x64xf32>
    %33 = arith.mulf %28, %32 : vector<16x64xf32>
    %34 = vector.extract_strided_slice %9 {offsets = [0, 0, 0], sizes = [1, 16, 64], strides = [1, 1, 1]} : vector<8x16x64xi1> to vector<1x16x64xi1>
    %35 = vector.shape_cast %34 : vector<1x16x64xi1> to vector<16x64xi1>
    %36 = arith.select %35, %33, %11 : vector<16x64xi1>, vector<16x64xf32>
    %37 = arith.select %35, %31, %12 : vector<16x64xi1>, vector<16x64xf32>
    %cst_17 = arith.constant 0.000000e+00 : f32
    %38 = vector.broadcast %cst_17 : f32 to vector<16x64xf32>
    %39 = arith.select %35, %33, %38 : vector<16x64xi1>, vector<16x64xf32>
    %40 = arith.addf %13, %39 : vector<16x64xf32>
    %41 = vector.extract_strided_slice %6 {offsets = [16, 0], sizes = [16, 256], strides = [1, 1]} : vector<128x256xf32> to vector<16x256xf32>
    %42 = arith.truncf %36 : vector<16x64xf32> to vector<16x64xbf16>
    %cst_18 = arith.constant dense<0.000000e+00> : vector<16x256xf32>
    %43 = tpu.matmul %42, %10, %cst_18 {dimension_numbers = #tpu.dot_dimension_numbers<[1], [0], [0], [1], [0, 0, 1, 1], [], []>} : vector<16x64xbf16>, vector<64x256xbf16>, vector<16x256xf32> -> vector<16x256xf32>
    %44 = arith.addf %41, %43 : vector<16x256xf32>
    %45 = vector.extract_strided_slice %44 {offsets = [0, 0], sizes = [16, 192], strides = [1, 1]} : vector<16x256xf32> to vector<16x192xf32>
    %46 = arith.negf %45 : vector<16x192xf32>
    %47 = math.exp %46 : vector<16x192xf32>
    %cst_19 = arith.constant 1.000000e+00 : f32
    %48 = vector.broadcast %cst_19 : f32 to vector<16x192xf32>
    %49 = arith.addf %48, %47 : vector<16x192xf32>
    %50 = arith.divf %48, %49 : vector<16x192xf32>
    %51 = vector.extract_strided_slice %44 {offsets = [0, 192], sizes = [16, 64], strides = [1, 1]} : vector<16x256xf32> to vector<16x64xf32>
    %52 = math.tanh %51 : vector<16x64xf32>
    %53 = vector.extract_strided_slice %50 {offsets = [0, 0], sizes = [16, 64], strides = [1, 1]} : vector<16x192xf32> to vector<16x64xf32>
    %54 = vector.extract_strided_slice %50 {offsets = [0, 64], sizes = [16, 64], strides = [1, 1]} : vector<16x192xf32> to vector<16x64xf32>
    %55 = vector.extract_strided_slice %50 {offsets = [0, 128], sizes = [16, 64], strides = [1, 1]} : vector<16x192xf32> to vector<16x64xf32>
    %56 = arith.mulf %54, %37 : vector<16x64xf32>
    %57 = arith.mulf %53, %52 : vector<16x64xf32>
    %58 = arith.addf %56, %57 : vector<16x64xf32>
    %59 = math.tanh %58 : vector<16x64xf32>
    %60 = arith.mulf %55, %59 : vector<16x64xf32>
    %61 = vector.extract_strided_slice %9 {offsets = [1, 0, 0], sizes = [1, 16, 64], strides = [1, 1, 1]} : vector<8x16x64xi1> to vector<1x16x64xi1>
    %62 = vector.shape_cast %61 : vector<1x16x64xi1> to vector<16x64xi1>
    %63 = arith.select %62, %60, %36 : vector<16x64xi1>, vector<16x64xf32>
    %64 = arith.select %62, %58, %37 : vector<16x64xi1>, vector<16x64xf32>
    %cst_20 = arith.constant 0.000000e+00 : f32
    %65 = vector.broadcast %cst_20 : f32 to vector<16x64xf32>
    %66 = arith.select %62, %60, %65 : vector<16x64xi1>, vector<16x64xf32>
    %67 = arith.addf %40, %66 : vector<16x64xf32>
    %68 = vector.extract_strided_slice %6 {offsets = [32, 0], sizes = [16, 256], strides = [1, 1]} : vector<128x256xf32> to vector<16x256xf32>
    %69 = arith.truncf %63 : vector<16x64xf32> to vector<16x64xbf16>
    %cst_21 = arith.constant dense<0.000000e+00> : vector<16x256xf32>
    %70 = tpu.matmul %69, %10, %cst_21 {dimension_numbers = #tpu.dot_dimension_numbers<[1], [0], [0], [1], [0, 0, 1, 1], [], []>} : vector<16x64xbf16>, vector<64x256xbf16>, vector<16x256xf32> -> vector<16x256xf32>
    %71 = arith.addf %68, %70 : vector<16x256xf32>
    %72 = vector.extract_strided_slice %71 {offsets = [0, 0], sizes = [16, 192], strides = [1, 1]} : vector<16x256xf32> to vector<16x192xf32>
    %73 = arith.negf %72 : vector<16x192xf32>
    %74 = math.exp %73 : vector<16x192xf32>
    %cst_22 = arith.constant 1.000000e+00 : f32
    %75 = vector.broadcast %cst_22 : f32 to vector<16x192xf32>
    %76 = arith.addf %75, %74 : vector<16x192xf32>
    %77 = arith.divf %75, %76 : vector<16x192xf32>
    %78 = vector.extract_strided_slice %71 {offsets = [0, 192], sizes = [16, 64], strides = [1, 1]} : vector<16x256xf32> to vector<16x64xf32>
    %79 = math.tanh %78 : vector<16x64xf32>
    %80 = vector.extract_strided_slice %77 {offsets = [0, 0], sizes = [16, 64], strides = [1, 1]} : vector<16x192xf32> to vector<16x64xf32>
    %81 = vector.extract_strided_slice %77 {offsets = [0, 64], sizes = [16, 64], strides = [1, 1]} : vector<16x192xf32> to vector<16x64xf32>
    %82 = vector.extract_strided_slice %77 {offsets = [0, 128], sizes = [16, 64], strides = [1, 1]} : vector<16x192xf32> to vector<16x64xf32>
    %83 = arith.mulf %81, %64 : vector<16x64xf32>
    %84 = arith.mulf %80, %79 : vector<16x64xf32>
    %85 = arith.addf %83, %84 : vector<16x64xf32>
    %86 = math.tanh %85 : vector<16x64xf32>
    %87 = arith.mulf %82, %86 : vector<16x64xf32>
    %88 = vector.extract_strided_slice %9 {offsets = [2, 0, 0], sizes = [1, 16, 64], strides = [1, 1, 1]} : vector<8x16x64xi1> to vector<1x16x64xi1>
    %89 = vector.shape_cast %88 : vector<1x16x64xi1> to vector<16x64xi1>
    %90 = arith.select %89, %87, %63 : vector<16x64xi1>, vector<16x64xf32>
    %91 = arith.select %89, %85, %64 : vector<16x64xi1>, vector<16x64xf32>
    %cst_23 = arith.constant 0.000000e+00 : f32
    %92 = vector.broadcast %cst_23 : f32 to vector<16x64xf32>
    %93 = arith.select %89, %87, %92 : vector<16x64xi1>, vector<16x64xf32>
    %94 = arith.addf %67, %93 : vector<16x64xf32>
    %95 = vector.extract_strided_slice %6 {offsets = [48, 0], sizes = [16, 256], strides = [1, 1]} : vector<128x256xf32> to vector<16x256xf32>
    %96 = arith.truncf %90 : vector<16x64xf32> to vector<16x64xbf16>
    %cst_24 = arith.constant dense<0.000000e+00> : vector<16x256xf32>
    %97 = tpu.matmul %96, %10, %cst_24 {dimension_numbers = #tpu.dot_dimension_numbers<[1], [0], [0], [1], [0, 0, 1, 1], [], []>} : vector<16x64xbf16>, vector<64x256xbf16>, vector<16x256xf32> -> vector<16x256xf32>
    %98 = arith.addf %95, %97 : vector<16x256xf32>
    %99 = vector.extract_strided_slice %98 {offsets = [0, 0], sizes = [16, 192], strides = [1, 1]} : vector<16x256xf32> to vector<16x192xf32>
    %100 = arith.negf %99 : vector<16x192xf32>
    %101 = math.exp %100 : vector<16x192xf32>
    %cst_25 = arith.constant 1.000000e+00 : f32
    %102 = vector.broadcast %cst_25 : f32 to vector<16x192xf32>
    %103 = arith.addf %102, %101 : vector<16x192xf32>
    %104 = arith.divf %102, %103 : vector<16x192xf32>
    %105 = vector.extract_strided_slice %98 {offsets = [0, 192], sizes = [16, 64], strides = [1, 1]} : vector<16x256xf32> to vector<16x64xf32>
    %106 = math.tanh %105 : vector<16x64xf32>
    %107 = vector.extract_strided_slice %104 {offsets = [0, 0], sizes = [16, 64], strides = [1, 1]} : vector<16x192xf32> to vector<16x64xf32>
    %108 = vector.extract_strided_slice %104 {offsets = [0, 64], sizes = [16, 64], strides = [1, 1]} : vector<16x192xf32> to vector<16x64xf32>
    %109 = vector.extract_strided_slice %104 {offsets = [0, 128], sizes = [16, 64], strides = [1, 1]} : vector<16x192xf32> to vector<16x64xf32>
    %110 = arith.mulf %108, %91 : vector<16x64xf32>
    %111 = arith.mulf %107, %106 : vector<16x64xf32>
    %112 = arith.addf %110, %111 : vector<16x64xf32>
    %113 = math.tanh %112 : vector<16x64xf32>
    %114 = arith.mulf %109, %113 : vector<16x64xf32>
    %115 = vector.extract_strided_slice %9 {offsets = [3, 0, 0], sizes = [1, 16, 64], strides = [1, 1, 1]} : vector<8x16x64xi1> to vector<1x16x64xi1>
    %116 = vector.shape_cast %115 : vector<1x16x64xi1> to vector<16x64xi1>
    %117 = arith.select %116, %114, %90 : vector<16x64xi1>, vector<16x64xf32>
    %118 = arith.select %116, %112, %91 : vector<16x64xi1>, vector<16x64xf32>
    %cst_26 = arith.constant 0.000000e+00 : f32
    %119 = vector.broadcast %cst_26 : f32 to vector<16x64xf32>
    %120 = arith.select %116, %114, %119 : vector<16x64xi1>, vector<16x64xf32>
    %121 = arith.addf %94, %120 : vector<16x64xf32>
    %122 = vector.extract_strided_slice %6 {offsets = [64, 0], sizes = [16, 256], strides = [1, 1]} : vector<128x256xf32> to vector<16x256xf32>
    %123 = arith.truncf %117 : vector<16x64xf32> to vector<16x64xbf16>
    %cst_27 = arith.constant dense<0.000000e+00> : vector<16x256xf32>
    %124 = tpu.matmul %123, %10, %cst_27 {dimension_numbers = #tpu.dot_dimension_numbers<[1], [0], [0], [1], [0, 0, 1, 1], [], []>} : vector<16x64xbf16>, vector<64x256xbf16>, vector<16x256xf32> -> vector<16x256xf32>
    %125 = arith.addf %122, %124 : vector<16x256xf32>
    %126 = vector.extract_strided_slice %125 {offsets = [0, 0], sizes = [16, 192], strides = [1, 1]} : vector<16x256xf32> to vector<16x192xf32>
    %127 = arith.negf %126 : vector<16x192xf32>
    %128 = math.exp %127 : vector<16x192xf32>
    %cst_28 = arith.constant 1.000000e+00 : f32
    %129 = vector.broadcast %cst_28 : f32 to vector<16x192xf32>
    %130 = arith.addf %129, %128 : vector<16x192xf32>
    %131 = arith.divf %129, %130 : vector<16x192xf32>
    %132 = vector.extract_strided_slice %125 {offsets = [0, 192], sizes = [16, 64], strides = [1, 1]} : vector<16x256xf32> to vector<16x64xf32>
    %133 = math.tanh %132 : vector<16x64xf32>
    %134 = vector.extract_strided_slice %131 {offsets = [0, 0], sizes = [16, 64], strides = [1, 1]} : vector<16x192xf32> to vector<16x64xf32>
    %135 = vector.extract_strided_slice %131 {offsets = [0, 64], sizes = [16, 64], strides = [1, 1]} : vector<16x192xf32> to vector<16x64xf32>
    %136 = vector.extract_strided_slice %131 {offsets = [0, 128], sizes = [16, 64], strides = [1, 1]} : vector<16x192xf32> to vector<16x64xf32>
    %137 = arith.mulf %135, %118 : vector<16x64xf32>
    %138 = arith.mulf %134, %133 : vector<16x64xf32>
    %139 = arith.addf %137, %138 : vector<16x64xf32>
    %140 = math.tanh %139 : vector<16x64xf32>
    %141 = arith.mulf %136, %140 : vector<16x64xf32>
    %142 = vector.extract_strided_slice %9 {offsets = [4, 0, 0], sizes = [1, 16, 64], strides = [1, 1, 1]} : vector<8x16x64xi1> to vector<1x16x64xi1>
    %143 = vector.shape_cast %142 : vector<1x16x64xi1> to vector<16x64xi1>
    %144 = arith.select %143, %141, %117 : vector<16x64xi1>, vector<16x64xf32>
    %145 = arith.select %143, %139, %118 : vector<16x64xi1>, vector<16x64xf32>
    %cst_29 = arith.constant 0.000000e+00 : f32
    %146 = vector.broadcast %cst_29 : f32 to vector<16x64xf32>
    %147 = arith.select %143, %141, %146 : vector<16x64xi1>, vector<16x64xf32>
    %148 = arith.addf %121, %147 : vector<16x64xf32>
    %149 = vector.extract_strided_slice %6 {offsets = [80, 0], sizes = [16, 256], strides = [1, 1]} : vector<128x256xf32> to vector<16x256xf32>
    %150 = arith.truncf %144 : vector<16x64xf32> to vector<16x64xbf16>
    %cst_30 = arith.constant dense<0.000000e+00> : vector<16x256xf32>
    %151 = tpu.matmul %150, %10, %cst_30 {dimension_numbers = #tpu.dot_dimension_numbers<[1], [0], [0], [1], [0, 0, 1, 1], [], []>} : vector<16x64xbf16>, vector<64x256xbf16>, vector<16x256xf32> -> vector<16x256xf32>
    %152 = arith.addf %149, %151 : vector<16x256xf32>
    %153 = vector.extract_strided_slice %152 {offsets = [0, 0], sizes = [16, 192], strides = [1, 1]} : vector<16x256xf32> to vector<16x192xf32>
    %154 = arith.negf %153 : vector<16x192xf32>
    %155 = math.exp %154 : vector<16x192xf32>
    %cst_31 = arith.constant 1.000000e+00 : f32
    %156 = vector.broadcast %cst_31 : f32 to vector<16x192xf32>
    %157 = arith.addf %156, %155 : vector<16x192xf32>
    %158 = arith.divf %156, %157 : vector<16x192xf32>
    %159 = vector.extract_strided_slice %152 {offsets = [0, 192], sizes = [16, 64], strides = [1, 1]} : vector<16x256xf32> to vector<16x64xf32>
    %160 = math.tanh %159 : vector<16x64xf32>
    %161 = vector.extract_strided_slice %158 {offsets = [0, 0], sizes = [16, 64], strides = [1, 1]} : vector<16x192xf32> to vector<16x64xf32>
    %162 = vector.extract_strided_slice %158 {offsets = [0, 64], sizes = [16, 64], strides = [1, 1]} : vector<16x192xf32> to vector<16x64xf32>
    %163 = vector.extract_strided_slice %158 {offsets = [0, 128], sizes = [16, 64], strides = [1, 1]} : vector<16x192xf32> to vector<16x64xf32>
    %164 = arith.mulf %162, %145 : vector<16x64xf32>
    %165 = arith.mulf %161, %160 : vector<16x64xf32>
    %166 = arith.addf %164, %165 : vector<16x64xf32>
    %167 = math.tanh %166 : vector<16x64xf32>
    %168 = arith.mulf %163, %167 : vector<16x64xf32>
    %169 = vector.extract_strided_slice %9 {offsets = [5, 0, 0], sizes = [1, 16, 64], strides = [1, 1, 1]} : vector<8x16x64xi1> to vector<1x16x64xi1>
    %170 = vector.shape_cast %169 : vector<1x16x64xi1> to vector<16x64xi1>
    %171 = arith.select %170, %168, %144 : vector<16x64xi1>, vector<16x64xf32>
    %172 = arith.select %170, %166, %145 : vector<16x64xi1>, vector<16x64xf32>
    %cst_32 = arith.constant 0.000000e+00 : f32
    %173 = vector.broadcast %cst_32 : f32 to vector<16x64xf32>
    %174 = arith.select %170, %168, %173 : vector<16x64xi1>, vector<16x64xf32>
    %175 = arith.addf %148, %174 : vector<16x64xf32>
    %176 = vector.extract_strided_slice %6 {offsets = [96, 0], sizes = [16, 256], strides = [1, 1]} : vector<128x256xf32> to vector<16x256xf32>
    %177 = arith.truncf %171 : vector<16x64xf32> to vector<16x64xbf16>
    %cst_33 = arith.constant dense<0.000000e+00> : vector<16x256xf32>
    %178 = tpu.matmul %177, %10, %cst_33 {dimension_numbers = #tpu.dot_dimension_numbers<[1], [0], [0], [1], [0, 0, 1, 1], [], []>} : vector<16x64xbf16>, vector<64x256xbf16>, vector<16x256xf32> -> vector<16x256xf32>
    %179 = arith.addf %176, %178 : vector<16x256xf32>
    %180 = vector.extract_strided_slice %179 {offsets = [0, 0], sizes = [16, 192], strides = [1, 1]} : vector<16x256xf32> to vector<16x192xf32>
    %181 = arith.negf %180 : vector<16x192xf32>
    %182 = math.exp %181 : vector<16x192xf32>
    %cst_34 = arith.constant 1.000000e+00 : f32
    %183 = vector.broadcast %cst_34 : f32 to vector<16x192xf32>
    %184 = arith.addf %183, %182 : vector<16x192xf32>
    %185 = arith.divf %183, %184 : vector<16x192xf32>
    %186 = vector.extract_strided_slice %179 {offsets = [0, 192], sizes = [16, 64], strides = [1, 1]} : vector<16x256xf32> to vector<16x64xf32>
    %187 = math.tanh %186 : vector<16x64xf32>
    %188 = vector.extract_strided_slice %185 {offsets = [0, 0], sizes = [16, 64], strides = [1, 1]} : vector<16x192xf32> to vector<16x64xf32>
    %189 = vector.extract_strided_slice %185 {offsets = [0, 64], sizes = [16, 64], strides = [1, 1]} : vector<16x192xf32> to vector<16x64xf32>
    %190 = vector.extract_strided_slice %185 {offsets = [0, 128], sizes = [16, 64], strides = [1, 1]} : vector<16x192xf32> to vector<16x64xf32>
    %191 = arith.mulf %189, %172 : vector<16x64xf32>
    %192 = arith.mulf %188, %187 : vector<16x64xf32>
    %193 = arith.addf %191, %192 : vector<16x64xf32>
    %194 = math.tanh %193 : vector<16x64xf32>
    %195 = arith.mulf %190, %194 : vector<16x64xf32>
    %196 = vector.extract_strided_slice %9 {offsets = [6, 0, 0], sizes = [1, 16, 64], strides = [1, 1, 1]} : vector<8x16x64xi1> to vector<1x16x64xi1>
    %197 = vector.shape_cast %196 : vector<1x16x64xi1> to vector<16x64xi1>
    %198 = arith.select %197, %195, %171 : vector<16x64xi1>, vector<16x64xf32>
    %199 = arith.select %197, %193, %172 : vector<16x64xi1>, vector<16x64xf32>
    %cst_35 = arith.constant 0.000000e+00 : f32
    %200 = vector.broadcast %cst_35 : f32 to vector<16x64xf32>
    %201 = arith.select %197, %195, %200 : vector<16x64xi1>, vector<16x64xf32>
    %202 = arith.addf %175, %201 : vector<16x64xf32>
    %203 = vector.extract_strided_slice %6 {offsets = [112, 0], sizes = [16, 256], strides = [1, 1]} : vector<128x256xf32> to vector<16x256xf32>
    %204 = arith.truncf %198 : vector<16x64xf32> to vector<16x64xbf16>
    %cst_36 = arith.constant dense<0.000000e+00> : vector<16x256xf32>
    %205 = tpu.matmul %204, %10, %cst_36 {dimension_numbers = #tpu.dot_dimension_numbers<[1], [0], [0], [1], [0, 0, 1, 1], [], []>} : vector<16x64xbf16>, vector<64x256xbf16>, vector<16x256xf32> -> vector<16x256xf32>
    %206 = arith.addf %203, %205 : vector<16x256xf32>
    %207 = vector.extract_strided_slice %206 {offsets = [0, 0], sizes = [16, 192], strides = [1, 1]} : vector<16x256xf32> to vector<16x192xf32>
    %208 = arith.negf %207 : vector<16x192xf32>
    %209 = math.exp %208 : vector<16x192xf32>
    %cst_37 = arith.constant 1.000000e+00 : f32
    %210 = vector.broadcast %cst_37 : f32 to vector<16x192xf32>
    %211 = arith.addf %210, %209 : vector<16x192xf32>
    %212 = arith.divf %210, %211 : vector<16x192xf32>
    %213 = vector.extract_strided_slice %206 {offsets = [0, 192], sizes = [16, 64], strides = [1, 1]} : vector<16x256xf32> to vector<16x64xf32>
    %214 = math.tanh %213 : vector<16x64xf32>
    %215 = vector.extract_strided_slice %212 {offsets = [0, 0], sizes = [16, 64], strides = [1, 1]} : vector<16x192xf32> to vector<16x64xf32>
    %216 = vector.extract_strided_slice %212 {offsets = [0, 64], sizes = [16, 64], strides = [1, 1]} : vector<16x192xf32> to vector<16x64xf32>
    %217 = vector.extract_strided_slice %212 {offsets = [0, 128], sizes = [16, 64], strides = [1, 1]} : vector<16x192xf32> to vector<16x64xf32>
    %218 = arith.mulf %216, %199 : vector<16x64xf32>
    %219 = arith.mulf %215, %214 : vector<16x64xf32>
    %220 = arith.addf %218, %219 : vector<16x64xf32>
    %221 = math.tanh %220 : vector<16x64xf32>
    %222 = arith.mulf %217, %221 : vector<16x64xf32>
    %223 = vector.extract_strided_slice %9 {offsets = [7, 0, 0], sizes = [1, 16, 64], strides = [1, 1, 1]} : vector<8x16x64xi1> to vector<1x16x64xi1>
    %224 = vector.shape_cast %223 : vector<1x16x64xi1> to vector<16x64xi1>
    %cst_38 = arith.constant 0.000000e+00 : f32
    %225 = vector.broadcast %cst_38 : f32 to vector<16x64xf32>
    %226 = arith.select %224, %222, %225 : vector<16x64xi1>, vector<16x64xf32>
    %227 = arith.addf %202, %226 : vector<16x64xf32>
    %c0_39 = arith.constant 0 : index
    %c0_40 = arith.constant 0 : index
    %228 = vector.load %arg2[%c0_39, %c0_40] : memref<16x1xi32, #tpu.memory_space<vmem>>, vector<16x1xi32>
    %229 = arith.sitofp %228 : vector<16x1xi32> to vector<16x1xf32>
    %cst_41 = arith.constant 1.000000e+00 : f32
    %230 = vector.broadcast %cst_41 : f32 to vector<16x1xf32>
    %231 = arith.maximumf %229, %230 : vector<16x1xf32>
    %232 = tpu.reciprocal %231 {approx = true} : vector<16x1xf32> -> vector<16x1xf32>
    %233 = vector.broadcast %232 : vector<16x1xf32> to vector<16x64xf32>
    %234 = arith.mulf %227, %233 : vector<16x64xf32>
    %235 = arith.truncf %234 : vector<16x64xf32> to vector<16x64xbf16>
    %c0_42 = arith.constant 0 : index
    %c0_43 = arith.constant 0 : index
    %236 = vector.load %arg7[%c0_42, %c0_43] : memref<64x128xbf16, #tpu.memory_space<vmem>>, vector<64x128xbf16>
    %cst_44 = arith.constant dense<0.000000e+00> : vector<16x128xf32>
    %237 = tpu.matmul %235, %236, %cst_44 {dimension_numbers = #tpu.dot_dimension_numbers<[1], [0], [0], [1], [0, 0, 1, 1], [], []>} : vector<16x64xbf16>, vector<64x128xbf16>, vector<16x128xf32> -> vector<16x128xf32>
    %c0_45 = arith.constant 0 : index
    %c0_46 = arith.constant 0 : index
    %238 = vector.load %arg8[%c0_45, %c0_46] : memref<1x128xf32, #tpu.memory_space<vmem>>, vector<1x128xf32>
    %239 = vector.broadcast %238 : vector<1x128xf32> to vector<16x128xf32>
    %240 = arith.addf %237, %239 : vector<16x128xf32>
    %c0_47 = arith.constant 0 : index
    %c0_48 = arith.constant 0 : index
    %241 = vector.load %arg9[%c0_47, %c0_48] : memref<16x128xf32, #tpu.memory_space<vmem>>, vector<16x128xf32>
    tpu.vector_store %arg9[%c0_47, %c0_48], %240 {strides = array<i32>} : memref<16x128xf32, #tpu.memory_space<vmem>>, vector<16x128xf32>,
    return
  }
  func.func @transform_0(%arg0: i32) -> (i32, i32, i32) {
    %c0_i32 = arith.constant 0 : i32
    %c0_i32_0 = arith.constant 0 : i32
    %c0_i32_1 = arith.constant 0 : i32
    return %c0_i32, %arg0, %c0_i32_0 : i32, i32, i32
  }
  func.func @transform_1(%arg0: i32) -> (i32, i32) {
    %c0_i32 = arith.constant 0 : i32
    %c0_i32_0 = arith.constant 0 : i32
    return %arg0, %c0_i32 : i32, i32
  }
  func.func @transform_2(%arg0: i32) -> (i32, i32, i32) {
    %c0_i32 = arith.constant 0 : i32
    %c0_i32_0 = arith.constant 0 : i32
    %c0_i32_1 = arith.constant 0 : i32
    return %c0_i32, %arg0, %c0_i32_0 : i32, i32, i32
  }
  func.func @transform_3(%arg0: i32) -> (i32, i32) {
    %c0_i32 = arith.constant 0 : i32
    %c0_i32_0 = arith.constant 0 : i32
    %c0_i32_1 = arith.constant 0 : i32
    return %c0_i32, %c0_i32_0 : i32, i32
  }
  func.func @transform_4(%arg0: i32) -> (i32, i32) {
    %c0_i32 = arith.constant 0 : i32
    %c0_i32_0 = arith.constant 0 : i32
    %c0_i32_1 = arith.constant 0 : i32
    return %c0_i32, %c0_i32_0 : i32, i32
  }
  func.func @transform_5(%arg0: i32) -> (i32, i32) {
    %c0_i32 = arith.constant 0 : i32
    %c0_i32_0 = arith.constant 0 : i32
    %c0_i32_1 = arith.constant 0 : i32
    return %c0_i32, %c0_i32_0 : i32, i32
  }
  func.func @transform_6(%arg0: i32) -> (i32, i32) {
    %c0_i32 = arith.constant 0 : i32
    %c0_i32_0 = arith.constant 0 : i32
    %c0_i32_1 = arith.constant 0 : i32
    return %c0_i32, %c0_i32_0 : i32, i32
  }
  func.func @transform_7(%arg0: i32) -> (i32, i32) {
    %c0_i32 = arith.constant 0 : i32
    %c0_i32_0 = arith.constant 0 : i32
    %c0_i32_1 = arith.constant 0 : i32
    return %c0_i32, %c0_i32_0 : i32, i32
  }
  func.func @transform_8(%arg0: i32) -> (i32, i32) {
    %c0_i32 = arith.constant 0 : i32
    %c0_i32_0 = arith.constant 0 : i32
    return %arg0, %c0_i32 : i32, i32
  }
}

</mosaic_0001>

<llo_original>
// kernel: textrnn_forward.1
$region0: #{textrnn_forward.1}
  #allocation0 [shape = 'u32[]', space=smem, size = 0x4, offset = 0x4, fixed_abs, tag = 'smem constant byte address 0x4 - core index']
  #allocation1 [shape = 'u32[144,128]{1,0:T(1,128)}', space=vmem, size = 0x12000, scoped, tag = 'internal scratch']
  %s0 = inlined_call_operand.vmem [shape: bf16[8,16,256], index: 0, kind: input, shape index: {}]
  %s1 = inlined_call_operand.vmem [shape: s32[16,1], index: 1, kind: input, shape index: {}]
  %s2 = inlined_call_operand.vmem [shape: f32[8,16,64], index: 2, kind: input, shape index: {}]
  %s3 = inlined_call_operand.vmem [shape: bf16[256,256], index: 3, kind: input, shape index: {}]
  %s4 = inlined_call_operand.vmem [shape: bf16[64,256], index: 4, kind: input, shape index: {}]
  %s5 = inlined_call_operand.vmem [shape: f32[1,256], index: 5, kind: input, shape index: {}]
  %s6 = inlined_call_operand.vmem [shape: bf16[64,128], index: 6, kind: input, shape index: {}]
  %s7 = inlined_call_operand.vmem [shape: f32[1,128], index: 7, kind: input, shape index: {}]
  %s8 = inlined_call_operand.vmem [shape: f32[16,128], index: 8, kind: output, shape index: {}]
  %s9 = sld [smem:[#allocation0]]
  $region42: #{textrnn_forward.1} parent=0
    _
  %s11 = ssub.s32 1, %s9
  %s12 = scalar_select 0, %s11, %s9
  // Predicated region
  $region2: #{textrnn_forward.1} parent=0 // pred_check
    _
  $region3: #{textrnn_forward.1} parent=0 // pred_check_branch
    %14 = sbr.rel (0) target = $region5
  $region4: #{textrnn_forward.1} parent=0 // pred_region
    _
  $region5: #{textrnn_forward.1} parent=0 // pred_fallthru
    _
  // Predicated region
  $region6: #{textrnn_forward.1} parent=0 // pred_check
    _
  $region7: #{textrnn_forward.1} parent=0 // pred_check_branch
    %16 = sbr.rel (0) target = $region9
  $region8: #{textrnn_forward.1} parent=0 // pred_region
    _
  $region9: #{textrnn_forward.1} parent=0 // pred_fallthru
    _
  // Predicated region
  $region10: #{textrnn_forward.1} parent=0 // pred_check
    _
  $region11: #{textrnn_forward.1} parent=0 // pred_check_branch
    %18 = sbr.rel (0) target = $region13
  $region12: #{textrnn_forward.1} parent=0 // pred_region
    _
  $region13: #{textrnn_forward.1} parent=0 // pred_fallthru
    _
  // Predicated region
  $region14: #{textrnn_forward.1} parent=0 // pred_check
    _
  $region15: #{textrnn_forward.1} parent=0 // pred_check_branch
    %20 = sbr.rel (0) target = $region17
  $region16: #{textrnn_forward.1} parent=0 // pred_region
    _
  $region17: #{textrnn_forward.1} parent=0 // pred_fallthru
    _
  // Predicated region
  $region18: #{textrnn_forward.1} parent=0 // pred_check
    _
  $region19: #{textrnn_forward.1} parent=0 // pred_check_branch
    %22 = sbr.rel (0) target = $region21
  $region20: #{textrnn_forward.1} parent=0 // pred_region
    _
  $region21: #{textrnn_forward.1} parent=0 // pred_fallthru
    _
  // Predicated region
  $region22: #{textrnn_forward.1} parent=0 // pred_check
    _
  $region23: #{textrnn_forward.1} parent=0 // pred_check_branch
    %24 = sbr.rel (0) target = $region25
  $region24: #{textrnn_forward.1} parent=0 // pred_region
    _
  $region25: #{textrnn_forward.1} parent=0 // pred_fallthru
    _
  // Predicated region
  $region26: #{textrnn_forward.1} parent=0 // pred_check
    _
  $region27: #{textrnn_forward.1} parent=0 // pred_check_branch
    %26 = sbr.rel (0) target = $region29
  $region28: #{textrnn_forward.1} parent=0 // pred_region
    _
  $region29: #{textrnn_forward.1} parent=0 // pred_fallthru
    _
  // Predicated region
  $region30: #{textrnn_forward.1} parent=0 // pred_check
    _
  $region31: #{textrnn_forward.1} parent=0 // pred_check_branch
    %28 = sbr.rel (0) target = $region33
  $region32: #{textrnn_forward.1} parent=0 // pred_region
    _
  $region33: #{textrnn_forward.1} parent=0 // pred_fallthru
    _
  %v30 = vld [vmem:[%s0] sm:$0xff]
  %v31 = vld [vmem:[%s0 + $0x8] sm:$0xff]
  %v32 = vld [vmem:[%s0 + $0x10] sm:$0xff]
  %v33 = vld [vmem:[%s0 + $0x18] sm:$0xff]
  %v34 = vld [vmem:[%s0 + $0x20] sm:$0xff]
  %v35 = vld [vmem:[%s0 + $0x28] sm:$0xff]
  %v36 = vld [vmem:[%s0 + $0x30] sm:$0xff]
  %v37 = vld [vmem:[%s0 + $0x38] sm:$0xff]
  %v38 = vld [vmem:[%s0 + $0x40] sm:$0xff]
  %v39 = vld [vmem:[%s0 + $0x48] sm:$0xff]
  %v40 = vld [vmem:[%s0 + $0x50] sm:$0xff]
  %v41 = vld [vmem:[%s0 + $0x58] sm:$0xff]
  %v42 = vld [vmem:[%s0 + $0x60] sm:$0xff]
  %v43 = vld [vmem:[%s0 + $0x68] sm:$0xff]
  %v44 = vld [vmem:[%s0 + $0x70] sm:$0xff]
  %v45 = vld [vmem:[%s0 + $0x78] sm:$0xff]
  %v46 = vld [vmem:[%s3] sm:$0xff]
  %v47 = vld [vmem:[%s3 + $0x8] sm:$0xff]
  %v48 = vld [vmem:[%s3 + $0x10] sm:$0xff]
  %v49 = vld [vmem:[%s3 + $0x18] sm:$0xff]
  %v50 = vld [vmem:[%s3 + $0x20] sm:$0xff]
  %v51 = vld [vmem:[%s3 + $0x28] sm:$0xff]
  %v52 = vld [vmem:[%s3 + $0x30] sm:$0xff]
  %v53 = vld [vmem:[%s3 + $0x38] sm:$0xff]
  %v54 = vld [vmem:[%s3 + $0x40] sm:$0xff]
  %v55 = vld [vmem:[%s3 + $0x48] sm:$0xff]
  %v56 = vld [vmem:[%s3 + $0x50] sm:$0xff]
  %v57 = vld [vmem:[%s3 + $0x58] sm:$0xff]
  %v58 = vld [vmem:[%s3 + $0x60] sm:$0xff]
  %v59 = vld [vmem:[%s3 + $0x68] sm:$0xff]
  %v60 = vld [vmem:[%s3 + $0x70] sm:$0xff]
  %v61 = vld [vmem:[%s3 + $0x78] sm:$0xff]
  %v62 = vld [vmem:[%s3 + $0x80] sm:$0xff]
  %v63 = vld [vmem:[%s3 + $0x88] sm:$0xff]
  %v64 = vld [vmem:[%s3 + $0x90] sm:$0xff]
  %v65 = vld [vmem:[%s3 + $0x98] sm:$0xff]
  %v66 = vld [vmem:[%s3 + $0xa0] sm:$0xff]
  %v67 = vld [vmem:[%s3 + $0xa8] sm:$0xff]
  %v68 = vld [vmem:[%s3 + $0xb0] sm:$0xff]
  %v69 = vld [vmem:[%s3 + $0xb8] sm:$0xff]
  %v70 = vld [vmem:[%s3 + $0xc0] sm:$0xff]
  %v71 = vld [vmem:[%s3 + $0xc8] sm:$0xff]
  %v72 = vld [vmem:[%s3 + $0xd0] sm:$0xff]
  %v73 = vld [vmem:[%s3 + $0xd8] sm:$0xff]
  %v74 = vld [vmem:[%s3 + $0xe0] sm:$0xff]
  %v75 = vld [vmem:[%s3 + $0xe8] sm:$0xff]
  %v76 = vld [vmem:[%s3 + $0xf0] sm:$0xff]
  %v77 = vld [vmem:[%s3 + $0xf8] sm:$0xff]
  %v78 = vld [vmem:[%s5] sm:$0x3]
  %v80 = vlaneseq
  %v81 = vshrl.u32 %v80, 7
  %v82 = vsub.s32 0, %v81
  %v83 = vrot.slane %v78, %v82
  %v84 = vlaneseq
  %v85 = vshrl.u32 %v84, 7
  %v86 = vsub.s32 1, %v85
  %v87 = vrot.slane %v78, %v86
  %v106 = vunpack.c.l.b16 %v30
  %v107 = vunpack.c.h.b16 %v30
  %v108 = vunpack.c.l.b16 %v31
  %v109 = vunpack.c.h.b16 %v31
  %v110 = vunpack.c.l.b16 %v32
  %v111 = vunpack.c.h.b16 %v32
  %v112 = vunpack.c.l.b16 %v33
  %v113 = vunpack.c.h.b16 %v33
  %v114 = vunpack.c.l.b16 %v34
  %v115 = vunpack.c.h.b16 %v34
  %v116 = vunpack.c.l.b16 %v35
  %v117 = vunpack.c.h.b16 %v35
  %v118 = vunpack.c.l.b16 %v36
  %v119 = vunpack.c.h.b16 %v36
  %v120 = vunpack.c.l.b16 %v37
  %v121 = vunpack.c.h.b16 %v37
  %v122 = vunpack.c.l.b16 %v38
  %v123 = vunpack.c.h.b16 %v38
  %v124 = vunpack.c.l.b16 %v39
  %v125 = vunpack.c.h.b16 %v39
  %v126 = vunpack.c.l.b16 %v40
  %v127 = vunpack.c.h.b16 %v40
  %v128 = vunpack.c.l.b16 %v41
  %v129 = vunpack.c.h.b16 %v41
  %v130 = vunpack.c.l.b16 %v42
  %v131 = vunpack.c.h.b16 %v42
  %v132 = vunpack.c.l.b16 %v43
  %v133 = vunpack.c.h.b16 %v43
  %v134 = vunpack.c.l.b16 %v44
  %v135 = vunpack.c.h.b16 %v44
  %v136 = vunpack.c.l.b16 %v45
  %v137 = vunpack.c.h.b16 %v45
  %v138 = vpack.c.b16 %v108, %v106
  %v139 = vpack.c.b16 %v109, %v107
  %v140 = vpack.c.b16 %v112, %v110
  %v141 = vpack.c.b16 %v113, %v111
  %v142 = vpack.c.b16 %v116, %v114
  %v143 = vpack.c.b16 %v117, %v115
  %v144 = vpack.c.b16 %v120, %v118
  %v145 = vpack.c.b16 %v121, %v119
  %v146 = vpack.c.b16 %v124, %v122
  %v147 = vpack.c.b16 %v125, %v123
  %v148 = vpack.c.b16 %v128, %v126
  %v149 = vpack.c.b16 %v129, %v127
  %v150 = vpack.c.b16 %v132, %v130
  %v151 = vpack.c.b16 %v133, %v131
  %v152 = vpack.c.b16 %v136, %v134
  %v153 = vpack.c.b16 %v137, %v135
  %v202 = vunpack.c.l.b16 %v46
  %v203 = vunpack.c.h.b16 %v46
  %v204 = vunpack.c.l.b16 %v47
  %v205 = vunpack.c.h.b16 %v47
  %v206 = vunpack.c.l.b16 %v48
  %v207 = vunpack.c.h.b16 %v48
  %v208 = vunpack.c.l.b16 %v49
  %v209 = vunpack.c.h.b16 %v49
  %v210 = vunpack.c.l.b16 %v50
  %v211 = vunpack.c.h.b16 %v50
  %v212 = vunpack.c.l.b16 %v51
  %v213 = vunpack.c.h.b16 %v51
  %v214 = vunpack.c.l.b16 %v52
  %v215 = vunpack.c.h.b16 %v52
  %v216 = vunpack.c.l.b16 %v53
  %v217 = vunpack.c.h.b16 %v53
  %v218 = vunpack.c.l.b16 %v54
  %v219 = vunpack.c.h.b16 %v54
  %v220 = vunpack.c.l.b16 %v55
  %v221 = vunpack.c.h.b16 %v55
  %v222 = vunpack.c.l.b16 %v56
  %v223 = vunpack.c.h.b16 %v56
  %v224 = vunpack.c.l.b16 %v57
  %v225 = vunpack.c.h.b16 %v57
  %v226 = vunpack.c.l.b16 %v58
  %v227 = vunpack.c.h.b16 %v58
  %v228 = vunpack.c.l.b16 %v59
  %v229 = vunpack.c.h.b16 %v59
  %v230 = vunpack.c.l.b16 %v60
  %v231 = vunpack.c.h.b16 %v60
  %v232 = vunpack.c.l.b16 %v61
  %v233 = vunpack.c.h.b16 %v61
  %v234 = vunpack.c.l.b16 %v62
  %v235 = vunpack.c.h.b16 %v62
  %v236 = vunpack.c.l.b16 %v63
  %v237 = vunpack.c.h.b16 %v63
  %v238 = vunpack.c.l.b16 %v64
  %v239 = vunpack.c.h.b16 %v64
  %v240 = vunpack.c.l.b16 %v65
  %v241 = vunpack.c.h.b16 %v65
  %v242 = vunpack.c.l.b16 %v66
  %v243 = vunpack.c.h.b16 %v66
  %v244 = vunpack.c.l.b16 %v67
  %v245 = vunpack.c.h.b16 %v67
  %v246 = vunpack.c.l.b16 %v68
  %v247 = vunpack.c.h.b16 %v68
  %v248 = vunpack.c.l.b16 %v69
  %v249 = vunpack.c.h.b16 %v69
  %v250 = vunpack.c.l.b16 %v70
  %v251 = vunpack.c.h.b16 %v70
  %v252 = vunpack.c.l.b16 %v71
  %v253 = vunpack.c.h.b16 %v71
  %v254 = vunpack.c.l.b16 %v72
  %v255 = vunpack.c.h.b16 %v72
  %v256 = vunpack.c.l.b16 %v73
  %v257 = vunpack.c.h.b16 %v73
  %v258 = vunpack.c.l.b16 %v74
  %v259 = vunpack.c.h.b16 %v74
  %v260 = vunpack.c.l.b16 %v75
  %v261 = vunpack.c.h.b16 %v75
  %v262 = vunpack.c.l.b16 %v76
  %v263 = vunpack.c.h.b16 %v76
  %v264 = vunpack.c.l.b16 %v77
  %v265 = vunpack.c.h.b16 %v77
  %v266 = vpack.c.b16 %v204, %v202
  %v267 = vpack.c.b16 %v205, %v203
  %v268 = vpack.c.b16 %v208, %v206
  %v269 = vpack.c.b16 %v209, %v207
  %v270 = vpack.c.b16 %v212, %v210
  %v271 = vpack.c.b16 %v213, %v211
  %v272 = vpack.c.b16 %v216, %v214
  %v273 = vpack.c.b16 %v217, %v215
  %v274 = vpack.c.b16 %v220, %v218
  %v275 = vpack.c.b16 %v221, %v219
  %v276 = vpack.c.b16 %v224, %v222
  %v277 = vpack.c.b16 %v225, %v223
  %v278 = vpack.c.b16 %v228, %v226
  %v279 = vpack.c.b16 %v229, %v227
  %v280 = vpack.c.b16 %v232, %v230
  %v281 = vpack.c.b16 %v233, %v231
  %v282 = vpack.c.b16 %v236, %v234
  %v283 = vpack.c.b16 %v237, %v235
  %v284 = vpack.c.b16 %v240, %v238
  %v285 = vpack.c.b16 %v241, %v239
  %v286 = vpack.c.b16 %v244, %v242
  %v287 = vpack.c.b16 %v245, %v243
  %v288 = vpack.c.b16 %v248, %v246
  %v289 = vpack.c.b16 %v249, %v247
  %v290 = vpack.c.b16 %v252, %v250
  %v291 = vpack.c.b16 %v253, %v251
  %v292 = vpack.c.b16 %v256, %v254
  %v293 = vpack.c.b16 %v257, %v255
  %v294 = vpack.c.b16 %v260, %v258
  %v295 = vpack.c.b16 %v261, %v259
  %v296 = vpack.c.b16 %v264, %v262
  %v297 = vpack.c.b16 %v265, %v263
  %330 = vmatprep.subr.bf16.mxu0 %v281
  %331 = vmatpush1.bf16.msra.mxu0 %v280
  %332 = vmatprep.subr.bf16.mxu0 %v279
  %333 = vmatpush1.bf16.msra.mxu0 %v278
  %334 = vmatprep.subr.bf16.mxu0 %v277
  %335 = vmatpush1.bf16.msra.mxu0 %v276
  %336 = vmatprep.subr.bf16.mxu0 %v275
  %337 = vmatpush1.bf16.msra.mxu0 %v274
  %338 = vmatprep.subr.bf16.mxu0 %v273
  %339 = vmatpush1.bf16.msra.mxu0 %v272
  %340 = vmatprep.subr.bf16.mxu0 %v271
  %341 = vmatpush1.bf16.msra.mxu0 %v270
  %342 = vmatprep.subr.bf16.mxu0 %v269
  %343 = vmatpush1.bf16.msra.mxu0 %v268
  %344 = vmatprep.subr.bf16.mxu0 %v267
  %345 = vmatpush1.bf16.msra.mxu0 %v266
  %346 = vmatprep.subr.bf16.mxu0 %v297
  %347 = vmatpush2.bf16.msra.mxu0 %v296
  %348 = vmatprep.subr.bf16.mxu0 %v295
  %349 = vmatpush2.bf16.msra.mxu0 %v294
  %350 = vmatprep.subr.bf16.mxu0 %v293
  %351 = vmatpush2.bf16.msra.mxu0 %v292
  %352 = vmatprep.subr.bf16.mxu0 %v291
  %353 = vmatpush2.bf16.msra.mxu0 %v290
  %354 = vmatprep.subr.bf16.mxu0 %v289
  %355 = vmatpush2.bf16.msra.mxu0 %v288
  %356 = vmatprep.subr.bf16.mxu0 %v287
  %357 = vmatpush2.bf16.msra.mxu0 %v286
  %358 = vmatprep.subr.bf16.mxu0 %v285
  %359 = vmatpush2.bf16.msra.mxu0 %v284
  %360 = vmatprep.subr.bf16.mxu0 %v283
  %361 = vmatpush2.bf16.msra.mxu0 %v282
  %362 = vmatprep.mubr.bf16.mxu0 %v139
  %363 = vmatmul.mubr.bf16.gmra.mxu0 %v138
  %v364 = vpop.f32.mrf.mxu0
  %v365 = vadd.f32 %v83, %v364
  %v366 = vpop.f32.mrf.mxu0
  %v367 = vadd.f32 %v87, %v366
  %v368 = vpop.f32.mrf.mxu0
  %v369 = vadd.f32 %v83, %v368
  %v370 = vpop.f32.mrf.mxu0
  %v371 = vadd.f32 %v87, %v370
  %372 = vmatprep.mubr.bf16.mxu0 %v141
  %373 = vmatmul.mubr.bf16.gmra.mxu0 %v140
  %v374 = vpop.f32.mrf.mxu0
  %v375 = vadd.f32 %v83, %v374
  %v376 = vpop.f32.mrf.mxu0
  %v377 = vadd.f32 %v87, %v376
  %v378 = vpop.f32.mrf.mxu0
  %v379 = vadd.f32 %v83, %v378
  %v380 = vpop.f32.mrf.mxu0
  %v381 = vadd.f32 %v87, %v380
  %382 = vmatprep.mubr.bf16.mxu0 %v143
  %383 = vmatmul.mubr.bf16.gmra.mxu0 %v142
  %v384 = vpop.f32.mrf.mxu0
  %v385 = vadd.f32 %v83, %v384
  %v386 = vpop.f32.mrf.mxu0
  %v387 = vadd.f32 %v87, %v386
  %v388 = vpop.f32.mrf.mxu0
  %v389 = vadd.f32 %v83, %v388
  %v390 = vpop.f32.mrf.mxu0
  %v391 = vadd.f32 %v87, %v390
  %392 = vmatprep.mubr.bf16.mxu0 %v145
  %393 = vmatmul.mubr.bf16.gmra.mxu0 %v144
  %v394 = vpop.f32.mrf.mxu0
  %v395 = vadd.f32 %v83, %v394
  %v396 = vpop.f32.mrf.mxu0
  %v397 = vadd.f32 %v87, %v396
  %v398 = vpop.f32.mrf.mxu0
  %v399 = vadd.f32 %v83, %v398
  %v400 = vpop.f32.mrf.mxu0
  %v401 = vadd.f32 %v87, %v400
  %402 = vmatprep.mubr.bf16.mxu0 %v147
  %403 = vmatmul.mubr.bf16.gmra.mxu0 %v146
  %v404 = vpop.f32.mrf.mxu0
  %v405 = vadd.f32 %v83, %v404
  %v406 = vpop.f32.mrf.mxu0
  %v407 = vadd.f32 %v87, %v406
  %v408 = vpop.f32.mrf.mxu0
  %v409 = vadd.f32 %v83, %v408
  %v410 = vpop.f32.mrf.mxu0
  %v411 = vadd.f32 %v87, %v410
  %412 = vmatprep.mubr.bf16.mxu0 %v149
  %413 = vmatmul.mubr.bf16.gmra.mxu0 %v148
  %v414 = vpop.f32.mrf.mxu0
  %v415 = vadd.f32 %v83, %v414
  %v416 = vpop.f32.mrf.mxu0
  %v417 = vadd.f32 %v87, %v416
  %v418 = vpop.f32.mrf.mxu0
  %v419 = vadd.f32 %v83, %v418
  %v420 = vpop.f32.mrf.mxu0
  %v421 = vadd.f32 %v87, %v420
  %422 = vmatprep.mubr.bf16.mxu0 %v151
  %423 = vmatmul.mubr.bf16.gmra.mxu0 %v150
  %v424 = vpop.f32.mrf.mxu0
  %v425 = vadd.f32 %v83, %v424
  %v426 = vpop.f32.mrf.mxu0
  %v427 = vadd.f32 %v87, %v426
  %v428 = vpop.f32.mrf.mxu0
  %v429 = vadd.f32 %v83, %v428
  %v430 = vpop.f32.mrf.mxu0
  %v431 = vadd.f32 %v87, %v430
  %432 = vmatprep.mubr.bf16.mxu0 %v153
  %433 = vmatmul.mubr.bf16.gmra.mxu0 %v152
  %v434 = vpop.f32.mrf.mxu0
  %v435 = vadd.f32 %v83, %v434
  %v436 = vpop.f32.mrf.mxu0
  %v437 = vadd.f32 %v87, %v436
  %v438 = vpop.f32.mrf.mxu0
  %v439 = vadd.f32 %v83, %v438
  %v440 = vpop.f32.mrf.mxu0
  %v441 = vadd.f32 %v87, %v440
  %442 = vdwg.mxu0
  %v443 = vld [vmem:[%s2] sm:$0xff]
  %v444 = vld [vmem:[%s2 + $0x8] sm:$0xff]
  %v445 = vld [vmem:[%s2 + $0x10] sm:$0xff]
  %v446 = vld [vmem:[%s2 + $0x18] sm:$0xff]
  %v447 = vld [vmem:[%s2 + $0x20] sm:$0xff]
  %v448 = vld [vmem:[%s2 + $0x28] sm:$0xff]
  %v449 = vld [vmem:[%s2 + $0x30] sm:$0xff]
  %v450 = vld [vmem:[%s2 + $0x38] sm:$0xff]
  %v451 = vld [vmem:[%s2 + $0x40] sm:$0xff]
  %v452 = vld [vmem:[%s2 + $0x48] sm:$0xff]
  %v453 = vld [vmem:[%s2 + $0x50] sm:$0xff]
  %v454 = vld [vmem:[%s2 + $0x58] sm:$0xff]
  %v455 = vld [vmem:[%s2 + $0x60] sm:$0xff]
  %v456 = vld [vmem:[%s2 + $0x68] sm:$0xff]
  %v457 = vld [vmem:[%s2 + $0x70] sm:$0xff]
  %v458 = vld [vmem:[%s2 + $0x78] sm:$0xff]
  %vm459 = vcmp.ne.f32.partialorder %v443, 0.0
  %vm460 = vcmp.ne.f32.partialorder %v444, 0.0
  %vm461 = vcmp.ne.f32.partialorder %v445, 0.0
  %vm462 = vcmp.ne.f32.partialorder %v446, 0.0
  %vm463 = vcmp.ne.f32.partialorder %v447, 0.0
  %vm464 = vcmp.ne.f32.partialorder %v448, 0.0
  %vm465 = vcmp.ne.f32.partialorder %v449, 0.0
  %vm466 = vcmp.ne.f32.partialorder %v450, 0.0
  %vm467 = vcmp.ne.f32.partialorder %v451, 0.0
  %vm468 = vcmp.ne.f32.partialorder %v452, 0.0
  %vm469 = vcmp.ne.f32.partialorder %v453, 0.0
  %vm470 = vcmp.ne.f32.partialorder %v454, 0.0
  %vm471 = vcmp.ne.f32.partialorder %v455, 0.0
  %vm472 = vcmp.ne.f32.partialorder %v456, 0.0
  %vm473 = vcmp.ne.f32.partialorder %v457, 0.0
  %vm474 = vcmp.ne.f32.partialorder %v458, 0.0
  %v475 = vld [vmem:[%s4] sm:$0xff]
  %v476 = vld [vmem:[%s4 + $0x8] sm:$0xff]
  %v477 = vld [vmem:[%s4 + $0x10] sm:$0xff]
  %v478 = vld [vmem:[%s4 + $0x18] sm:$0xff]
  %v479 = vld [vmem:[%s4 + $0x20] sm:$0xff]
  %v480 = vld [vmem:[%s4 + $0x28] sm:$0xff]
  %v481 = vld [vmem:[%s4 + $0x30] sm:$0xff]
  %v482 = vld [vmem:[%s4 + $0x38] sm:$0xff]
  %v491 = vunpack.c.l.b16 %v475
  %v492 = vunpack.c.h.b16 %v475
  %v493 = vunpack.c.l.b16 %v476
  %v494 = vunpack.c.h.b16 %v476
  %v495 = vunpack.c.l.b16 %v477
  %v496 = vunpack.c.h.b16 %v477
  %v497 = vunpack.c.l.b16 %v478
  %v498 = vunpack.c.h.b16 %v478
  %v499 = vunpack.c.l.b16 %v479
  %v500 = vunpack.c.h.b16 %v479
  %v501 = vunpack.c.l.b16 %v480
  %v502 = vunpack.c.h.b16 %v480
  %v503 = vunpack.c.l.b16 %v481
  %v504 = vunpack.c.h.b16 %v481
  %v505 = vunpack.c.l.b16 %v482
  %v506 = vunpack.c.h.b16 %v482
  %v507 = vpack.c.b16 %v493, %v491
  %v508 = vpack.c.b16 %v494, %v492
  %v509 = vpack.c.b16 %v497, %v495
  %v510 = vpack.c.b16 %v498, %v496
  %v511 = vpack.c.b16 %v501, %v499
  %v512 = vpack.c.b16 %v502, %v500
  %v513 = vpack.c.b16 %v505, %v503
  %v514 = vpack.c.b16 %v506, %v504
  %vm523 = vcmask 523264
  %v525 = vsel %vm523, 0, 0
  %527 = vmatprep.subr.bf16.mxu0 0
  %528 = vmatpush1.bf16.msra.mxu0 0
  %529 = vmatprep.subr.bf16.mxu0 0
  %530 = vmatpush1.bf16.msra.mxu0 0
  %531 = vmatprep.subr.bf16.mxu0 0
  %532 = vmatpush1.bf16.msra.mxu0 0
  %533 = vmatprep.subr.bf16.mxu0 0
  %534 = vmatpush1.bf16.msra.mxu0 0
  %535 = vmatprep.subr.bf16.mxu0 %v514
  %536 = vmatpush1.bf16.msra.mxu0 %v513
  %537 = vmatprep.subr.bf16.mxu0 %v512
  %538 = vmatpush1.bf16.msra.mxu0 %v511
  %539 = vmatprep.subr.bf16.mxu0 %v510
  %540 = vmatpush1.bf16.msra.mxu0 %v509
  %541 = vmatprep.subr.bf16.mxu0 %v508
  %542 = vmatpush1.bf16.msra.mxu0 %v507
  %543 = vmatprep.subr.bf16.mxu0 0
  %544 = vmatpush2.bf16.msra.mxu0 0
  %545 = vmatprep.subr.bf16.mxu0 0
  %546 = vmatpush2.bf16.msra.mxu0 0
  %547 = vmatprep.subr.bf16.mxu0 0
  %548 = vmatpush2.bf16.msra.mxu0 0
  %549 = vmatprep.subr.bf16.mxu0 0
  %550 = vmatpush2.bf16.msra.mxu0 0
  %551 = vmatprep.subr.bf16.mxu0 0
  %552 = vmatpush2.bf16.msra.mxu0 0
  %553 = vmatprep.subr.bf16.mxu0 0
  %554 = vmatpush2.bf16.msra.mxu0 0
  %555 = vmatprep.subr.bf16.mxu0 0
  %556 = vmatpush2.bf16.msra.mxu0 0
  %557 = vmatprep.subr.bf16.mxu0 0
  %558 = vmatpush2.bf16.msra.mxu0 0
  %559 = vmatprep.mubr.bf16.mxu0 0
  %560 = vmatmul.mubr.bf16.gmra.mxu0 %v525
  %v561 = vpop.f32.mrf.mxu0
  %v562 = vadd.f32 0.0, %v561
  %v563 = vpop.f32.mrf.mxu0
  %v564 = vadd.f32 0.0, %v563
  %v565 = vpop.f32.mrf.mxu0
  %v566 = vadd.f32 0.0, %v565
  %v567 = vpop.f32.mrf.mxu0
  %v568 = vadd.f32 0.0, %v567
  %569 = vdwg.mxu0
  %v570 = vadd.f32 %v365, %v562
  %v571 = vadd.f32 %v367, %v564
  %v572 = vadd.f32 %v369, %v566
  %v573 = vadd.f32 %v371, %v568
  %v574 = vxor.u32 %v570, 2147483648
  %v575 = vxor.u32 %v571, 2147483648
  %v576 = vxor.u32 %v572, 2147483648
  %v577 = vxor.u32 %v573, 2147483648
  %v578 = vmul.f32 %v574, 1.442695
  %v579 = vpow.pop %v578
  %v580 = vmul.f32 %v575, 1.442695
  %v581 = vpow.pop %v580
  %v582 = vmul.f32 %v576, 1.442695
  %v583 = vpow.pop %v582
  %v584 = vmul.f32 %v577, 1.442695
  %v585 = vpow.pop %v584
  %v586 = vadd.f32 %v579, 1.0
  %v587 = vadd.f32 %v581, 1.0
  %v588 = vadd.f32 %v583, 1.0
  %v589 = vadd.f32 %v585, 1.0
  %v590 = vrcp.pop %v586
  %v591 = vmul.f32 1.0, %v590
  %v592 = vrcp.pop %v587
  %v593 = vmul.f32 1.0, %v592
  %v594 = vrcp.pop %v588
  %v595 = vmul.f32 1.0, %v594
  %v596 = vrcp.pop %v589
  %v597 = vmul.f32 1.0, %v596
  %v598 = vtanh.pop %v571
  %v599 = vtanh.pop %v573
  %v600 = vmul.f32 %v591, 0.0
  %v601 = vmul.f32 %v595, 0.0
  %604 = vrot.lane.b32.xlu0 %v598, 64
  %v605 = vpop.permute.xlu0 %604
  %606 = vrot.lane.b32.xlu0 %v599, 64
  %v607 = vpop.permute.xlu0 %606
  %v610 = vmul.f32 %v591, %v605
  %v611 = vmul.f32 %v595, %v607
  %614 = vrot.lane.b32.xlu0 %v610, 64
  %v615 = vpop.permute.xlu0 %614
  %616 = vrot.lane.b32.xlu0 %v611, 64
  %v617 = vpop.permute.xlu0 %616
  %v620 = vadd.f32 %v600, %v615
  %v621 = vadd.f32 %v601, %v617
  %v622 = vtanh.pop %v620
  %v623 = vtanh.pop %v621
  %626 = vrot.lane.b32.xlu0 %v622, 64
  %v627 = vpop.permute.xlu0 %626
  %628 = vrot.lane.b32.xlu0 %v623, 64
  %v629 = vpop.permute.xlu0 %628
  %v632 = vmul.f32 %v593, %v627
  %v633 = vmul.f32 %v597, %v629
  %v634 = vsel %vm459, %v632, 0.0
  %v635 = vsel %vm460, %v633, 0.0
  %638 = vrot.lane.b32.xlu0 %v620, 64
  %v639 = vpop.permute.xlu0 %638
  %640 = vrot.lane.b32.xlu0 %v621, 64
  %v641 = vpop.permute.xlu0 %640
  %v644 = vsel %vm459, %v639, 0.0
  %v645 = vsel %vm460, %v641, 0.0
  %v646 = vadd.f32 %v634, 0.0
  %v647 = vadd.f32 %v635, 0.0
  %v648 = vpack.c.bf16 %v635, %v634
  %v650 = vsel %vm523, %v648, 0
  %652 = vmatprep.subr.bf16.mxu0 0
  %653 = vmatpush1.bf16.msra.mxu0 0
  %654 = vmatprep.subr.bf16.mxu0 0
  %655 = vmatpush1.bf16.msra.mxu0 0
  %656 = vmatprep.subr.bf16.mxu0 0
  %657 = vmatpush1.bf16.msra.mxu0 0
  %658 = vmatprep.subr.bf16.mxu0 0
  %659 = vmatpush1.bf16.msra.mxu0 0
  %660 = vmatprep.subr.bf16.mxu0 %v514
  %661 = vmatpush1.bf16.msra.mxu0 %v513
  %662 = vmatprep.subr.bf16.mxu0 %v512
  %663 = vmatpush1.bf16.msra.mxu0 %v511
  %664 = vmatprep.subr.bf16.mxu0 %v510
  %665 = vmatpush1.bf16.msra.mxu0 %v509
  %666 = vmatprep.subr.bf16.mxu0 %v508
  %667 = vmatpush1.bf16.msra.mxu0 %v507
  %668 = vmatprep.subr.bf16.mxu0 0
  %669 = vmatpush2.bf16.msra.mxu0 0
  %670 = vmatprep.subr.bf16.mxu0 0
  %671 = vmatpush2.bf16.msra.mxu0 0
  %672 = vmatprep.subr.bf16.mxu0 0
  %673 = vmatpush2.bf16.msra.mxu0 0
  %674 = vmatprep.subr.bf16.mxu0 0
  %675 = vmatpush2.bf16.msra.mxu0 0
  %676 = vmatprep.subr.bf16.mxu0 0
  %677 = vmatpush2.bf16.msra.mxu0 0
  %678 = vmatprep.subr.bf16.mxu0 0
  %679 = vmatpush2.bf16.msra.mxu0 0
  %680 = vmatprep.subr.bf16.mxu0 0
  %681 = vmatpush2.bf16.msra.mxu0 0
  %682 = vmatprep.subr.bf16.mxu0 0
  %683 = vmatpush2.bf16.msra.mxu0 0
  %684 = vmatprep.mubr.bf16.mxu0 0
  %685 = vmatmul.mubr.bf16.gmra.mxu0 %v650
  %v686 = vpop.f32.mrf.mxu0
  %v687 = vadd.f32 0.0, %v686
  %v688 = vpop.f32.mrf.mxu0
  %v689 = vadd.f32 0.0, %v688
  %v690 = vpop.f32.mrf.mxu0
  %v691 = vadd.f32 0.0, %v690
  %v692 = vpop.f32.mrf.mxu0
  %v693 = vadd.f32 0.0, %v692
  %694 = vdwg.mxu0
  %v695 = vadd.f32 %v375, %v687
  %v696 = vadd.f32 %v377, %v689
  %v697 = vadd.f32 %v379, %v691
  %v698 = vadd.f32 %v381, %v693
  %v699 = vxor.u32 %v695, 2147483648
  %v700 = vxor.u32 %v696, 2147483648
  %v701 = vxor.u32 %v697, 2147483648
  %v702 = vxor.u32 %v698, 2147483648
  %v703 = vmul.f32 %v699, 1.442695
  %v704 = vpow.pop %v703
  %v705 = vmul.f32 %v700, 1.442695
  %v706 = vpow.pop %v705
  %v707 = vmul.f32 %v701, 1.442695
  %v708 = vpow.pop %v707
  %v709 = vmul.f32 %v702, 1.442695
  %v710 = vpow.pop %v709
  %v711 = vadd.f32 %v704, 1.0
  %v712 = vadd.f32 %v706, 1.0
  %v713 = vadd.f32 %v708, 1.0
  %v714 = vadd.f32 %v710, 1.0
  %v715 = vrcp.pop %v711
  %v716 = vmul.f32 1.0, %v715
  %v717 = vrcp.pop %v712
  %v718 = vmul.f32 1.0, %v717
  %v719 = vrcp.pop %v713
  %v720 = vmul.f32 1.0, %v719
  %v721 = vrcp.pop %v714
  %v722 = vmul.f32 1.0, %v721
  %v723 = vtanh.pop %v696
  %v724 = vtanh.pop %v698
  %727 = vrot.lane.b32.xlu0 %v644, 64
  %v728 = vpop.permute.xlu0 %727
  %729 = vrot.lane.b32.xlu0 %v645, 64
  %v730 = vpop.permute.xlu0 %729
  %v733 = vmul.f32 %v716, %v728
  %v734 = vmul.f32 %v720, %v730
  %737 = vrot.lane.b32.xlu0 %v723, 64
  %v738 = vpop.permute.xlu0 %737
  %739 = vrot.lane.b32.xlu0 %v724, 64
  %v740 = vpop.permute.xlu0 %739
  %v743 = vmul.f32 %v716, %v738
  %v744 = vmul.f32 %v720, %v740
  %747 = vrot.lane.b32.xlu0 %v743, 64
  %v748 = vpop.permute.xlu0 %747
  %749 = vrot.lane.b32.xlu0 %v744, 64
  %v750 = vpop.permute.xlu0 %749
  %v753 = vadd.f32 %v733, %v748
  %v754 = vadd.f32 %v734, %v750
  %v755 = vtanh.pop %v753
  %v756 = vtanh.pop %v754
  %759 = vrot.lane.b32.xlu0 %v755, 64
  %v760 = vpop.permute.xlu0 %759
  %761 = vrot.lane.b32.xlu0 %v756, 64
  %v762 = vpop.permute.xlu0 %761
  %v765 = vmul.f32 %v718, %v760
  %v766 = vmul.f32 %v722, %v762
  %v767 = vsel %vm461, %v765, %v634
  %v768 = vsel %vm462, %v766, %v635
  %771 = vrot.lane.b32.xlu0 %v753, 64
  %v772 = vpop.permute.xlu0 %771
  %773 = vrot.lane.b32.xlu0 %v754, 64
  %v774 = vpop.permute.xlu0 %773
  %v777 = vsel %vm461, %v772, %v644
  %v778 = vsel %vm462, %v774, %v645
  %v779 = vsel %vm461, %v765, 0.0
  %v780 = vsel %vm462, %v766, 0.0
  %v781 = vadd.f32 %v646, %v779
  %v782 = vadd.f32 %v647, %v780
  %v783 = vpack.c.bf16 %v768, %v767
  %v785 = vsel %vm523, %v783, 0
  %787 = vmatprep.subr.bf16.mxu0 0
  %788 = vmatpush1.bf16.msra.mxu0 0
  %789 = vmatprep.subr.bf16.mxu0 0
  %790 = vmatpush1.bf16.msra.mxu0 0
  %791 = vmatprep.subr.bf16.mxu0 0
  %792 = vmatpush1.bf16.msra.mxu0 0
  %793 = vmatprep.subr.bf16.mxu0 0
  %794 = vmatpush1.bf16.msra.mxu0 0
  %795 = vmatprep.subr.bf16.mxu0 %v514
  %796 = vmatpush1.bf16.msra.mxu0 %v513
  %797 = vmatprep.subr.bf16.mxu0 %v512
  %798 = vmatpush1.bf16.msra.mxu0 %v511
  %799 = vmatprep.subr.bf16.mxu0 %v510
  %800 = vmatpush1.bf16.msra.mxu0 %v509
  %801 = vmatprep.subr.bf16.mxu0 %v508
  %802 = vmatpush1.bf16.msra.mxu0 %v507
  %803 = vmatprep.subr.bf16.mxu0 0
  %804 = vmatpush2.bf16.msra.mxu0 0
  %805 = vmatprep.subr.bf16.mxu0 0
  %806 = vmatpush2.bf16.msra.mxu0 0
  %807 = vmatprep.subr.bf16.mxu0 0
  %808 = vmatpush2.bf16.msra.mxu0 0
  %809 = vmatprep.subr.bf16.mxu0 0
  %810 = vmatpush2.bf16.msra.mxu0 0
  %811 = vmatprep.subr.bf16.mxu0 0
  %812 = vmatpush2.bf16.msra.mxu0 0
  %813 = vmatprep.subr.bf16.mxu0 0
  %814 = vmatpush2.bf16.msra.mxu0 0
  %815 = vmatprep.subr.bf16.mxu0 0
  %816 = vmatpush2.bf16.msra.mxu0 0
  %817 = vmatprep.subr.bf16.mxu0 0
  %818 = vmatpush2.bf16.msra.mxu0 0
  %819 = vmatprep.mubr.bf16.mxu0 0
  %820 = vmatmul.mubr.bf16.gmra.mxu0 %v785
  %v821 = vpop.f32.mrf.mxu0
  %v822 = vadd.f32 0.0, %v821
  %v823 = vpop.f32.mrf.mxu0
  %v824 = vadd.f32 0.0, %v823
  %v825 = vpop.f32.mrf.mxu0
  %v826 = vadd.f32 0.0, %v825
  %v827 = vpop.f32.mrf.mxu0
  %v828 = vadd.f32 0.0, %v827
  %829 = vdwg.mxu0
  %v830 = vadd.f32 %v385, %v822
  %v831 = vadd.f32 %v387, %v824
  %v832 = vadd.f32 %v389, %v826
  %v833 = vadd.f32 %v391, %v828
  %v834 = vxor.u32 %v830, 2147483648
  %v835 = vxor.u32 %v831, 2147483648
  %v836 = vxor.u32 %v832, 2147483648
  %v837 = vxor.u32 %v833, 2147483648
  %v838 = vmul.f32 %v834, 1.442695
  %v839 = vpow.pop %v838
  %v840 = vmul.f32 %v835, 1.442695
  %v841 = vpow.pop %v840
  %v842 = vmul.f32 %v836, 1.442695
  %v843 = vpow.pop %v842
  %v844 = vmul.f32 %v837, 1.442695
  %v845 = vpow.pop %v844
  %v846 = vadd.f32 %v839, 1.0
  %v847 = vadd.f32 %v841, 1.0
  %v848 = vadd.f32 %v843, 1.0
  %v849 = vadd.f32 %v845, 1.0
  %v850 = vrcp.pop %v846
  %v851 = vmul.f32 1.0, %v850
  %v852 = vrcp.pop %v847
  %v853 = vmul.f32 1.0, %v852
  %v854 = vrcp.pop %v848
  %v855 = vmul.f32 1.0, %v854
  %v856 = vrcp.pop %v849
  %v857 = vmul.f32 1.0, %v856
  %v858 = vtanh.pop %v831
  %v859 = vtanh.pop %v833
  %862 = vrot.lane.b32.xlu0 %v777, 64
  %v863 = vpop.permute.xlu0 %862
  %864 = vrot.lane.b32.xlu0 %v778, 64
  %v865 = vpop.permute.xlu0 %864
  %v868 = vmul.f32 %v851, %v863
  %v869 = vmul.f32 %v855, %v865
  %872 = vrot.lane.b32.xlu0 %v858, 64
  %v873 = vpop.permute.xlu0 %872
  %874 = vrot.lane.b32.xlu0 %v859, 64
  %v875 = vpop.permute.xlu0 %874
  %v878 = vmul.f32 %v851, %v873
  %v879 = vmul.f32 %v855, %v875
  %882 = vrot.lane.b32.xlu0 %v878, 64
  %v883 = vpop.permute.xlu0 %882
  %884 = vrot.lane.b32.xlu0 %v879, 64
  %v885 = vpop.permute.xlu0 %884
  %v888 = vadd.f32 %v868, %v883
  %v889 = vadd.f32 %v869, %v885
  %v890 = vtanh.pop %v888
  %v891 = vtanh.pop %v889
  %894 = vrot.lane.b32.xlu0 %v890, 64
  %v895 = vpop.permute.xlu0 %894
  %896 = vrot.lane.b32.xlu0 %v891, 64
  %v897 = vpop.permute.xlu0 %896
  %v900 = vmul.f32 %v853, %v895
  %v901 = vmul.f32 %v857, %v897
  %v902 = vsel %vm463, %v900, %v767
  %v903 = vsel %vm464, %v901, %v768
  %906 = vrot.lane.b32.xlu0 %v888, 64
  %v907 = vpop.permute.xlu0 %906
  %908 = vrot.lane.b32.xlu0 %v889, 64
  %v909 = vpop.permute.xlu0 %908
  %v912 = vsel %vm463, %v907, %v777
  %v913 = vsel %vm464, %v909, %v778
  %v914 = vsel %vm463, %v900, 0.0
  %v915 = vsel %vm464, %v901, 0.0
  %v916 = vadd.f32 %v781, %v914
  %v917 = vadd.f32 %v782, %v915
  %v918 = vpack.c.bf16 %v903, %v902
  %v920 = vsel %vm523, %v918, 0
  %922 = vmatprep.subr.bf16.mxu0 0
  %923 = vmatpush1.bf16.msra.mxu0 0
  %924 = vmatprep.subr.bf16.mxu0 0
  %925 = vmatpush1.bf16.msra.mxu0 0
  %926 = vmatprep.subr.bf16.mxu0 0
  %927 = vmatpush1.bf16.msra.mxu0 0
  %928 = vmatprep.subr.bf16.mxu0 0
  %929 = vmatpush1.bf16.msra.mxu0 0
  %930 = vmatprep.subr.bf16.mxu0 %v514
  %931 = vmatpush1.bf16.msra.mxu0 %v513
  %932 = vmatprep.subr.bf16.mxu0 %v512
  %933 = vmatpush1.bf16.msra.mxu0 %v511
  %934 = vmatprep.subr.bf16.mxu0 %v510
  %935 = vmatpush1.bf16.msra.mxu0 %v509
  %936 = vmatprep.subr.bf16.mxu0 %v508
  %937 = vmatpush1.bf16.msra.mxu0 %v507
  %938 = vmatprep.subr.bf16.mxu0 0
  %939 = vmatpush2.bf16.msra.mxu0 0
  %940 = vmatprep.subr.bf16.mxu0 0
  %941 = vmatpush2.bf16.msra.mxu0 0
  %942 = vmatprep.subr.bf16.mxu0 0
  %943 = vmatpush2.bf16.msra.mxu0 0
  %944 = vmatprep.subr.bf16.mxu0 0
  %945 = vmatpush2.bf16.msra.mxu0 0
  %946 = vmatprep.subr.bf16.mxu0 0
  %947 = vmatpush2.bf16.msra.mxu0 0
  %948 = vmatprep.subr.bf16.mxu0 0
  %949 = vmatpush2.bf16.msra.mxu0 0
  %950 = vmatprep.subr.bf16.mxu0 0
  %951 = vmatpush2.bf16.msra.mxu0 0
  %952 = vmatprep.subr.bf16.mxu0 0
  %953 = vmatpush2.bf16.msra.mxu0 0
  %954 = vmatprep.mubr.bf16.mxu0 0
  %955 = vmatmul.mubr.bf16.gmra.mxu0 %v920
  %v956 = vpop.f32.mrf.mxu0
  %v957 = vadd.f32 0.0, %v956
  %v958 = vpop.f32.mrf.mxu0
  %v959 = vadd.f32 0.0, %v958
  %v960 = vpop.f32.mrf.mxu0
  %v961 = vadd.f32 0.0, %v960
  %v962 = vpop.f32.mrf.mxu0
  %v963 = vadd.f32 0.0, %v962
  %964 = vdwg.mxu0
  %v965 = vadd.f32 %v395, %v957
  %v966 = vadd.f32 %v397, %v959
  %v967 = vadd.f32 %v399, %v961
  %v968 = vadd.f32 %v401, %v963
  %v969 = vxor.u32 %v965, 2147483648
  %v970 = vxor.u32 %v966, 2147483648
  %v971 = vxor.u32 %v967, 2147483648
  %v972 = vxor.u32 %v968, 2147483648
  %v973 = vmul.f32 %v969, 1.442695
  %v974 = vpow.pop %v973
  %v975 = vmul.f32 %v970, 1.442695
  %v976 = vpow.pop %v975
  %v977 = vmul.f32 %v971, 1.442695
  %v978 = vpow.pop %v977
  %v979 = vmul.f32 %v972, 1.442695
  %v980 = vpow.pop %v979
  %v981 = vadd.f32 %v974, 1.0
  %v982 = vadd.f32 %v976, 1.0
  %v983 = vadd.f32 %v978, 1.0
  %v984 = vadd.f32 %v980, 1.0
  %v985 = vrcp.pop %v981
  %v986 = vmul.f32 1.0, %v985
  %v987 = vrcp.pop %v982
  %v988 = vmul.f32 1.0, %v987
  %v989 = vrcp.pop %v983
  %v990 = vmul.f32 1.0, %v989
  %v991 = vrcp.pop %v984
  %v992 = vmul.f32 1.0, %v991
  %v993 = vtanh.pop %v966
  %v994 = vtanh.pop %v968
  %997 = vrot.lane.b32.xlu0 %v912, 64
  %v998 = vpop.permute.xlu0 %997
  %999 = vrot.lane.b32.xlu0 %v913, 64
  %v1000 = vpop.permute.xlu0 %999
  %v1003 = vmul.f32 %v986, %v998
  %v1004 = vmul.f32 %v990, %v1000
  %1007 = vrot.lane.b32.xlu0 %v993, 64
  %v1008 = vpop.permute.xlu0 %1007
  %1009 = vrot.lane.b32.xlu0 %v994, 64
  %v1010 = vpop.permute.xlu0 %1009
  %v1013 = vmul.f32 %v986, %v1008
  %v1014 = vmul.f32 %v990, %v1010
  %1017 = vrot.lane.b32.xlu0 %v1013, 64
  %v1018 = vpop.permute.xlu0 %1017
  %1019 = vrot.lane.b32.xlu0 %v1014, 64
  %v1020 = vpop.permute.xlu0 %1019
  %v1023 = vadd.f32 %v1003, %v1018
  %v1024 = vadd.f32 %v1004, %v1020
  %v1025 = vtanh.pop %v1023
  %v1026 = vtanh.pop %v1024
  %1029 = vrot.lane.b32.xlu0 %v1025, 64
  %v1030 = vpop.permute.xlu0 %1029
  %1031 = vrot.lane.b32.xlu0 %v1026, 64
  %v1032 = vpop.permute.xlu0 %1031
  %v1035 = vmul.f32 %v988, %v1030
  %v1036 = vmul.f32 %v992, %v1032
  %v1037 = vsel %vm465, %v1035, %v902
  %v1038 = vsel %vm466, %v1036, %v903
  %1041 = vrot.lane.b32.xlu0 %v1023, 64
  %v1042 = vpop.permute.xlu0 %1041
  %1043 = vrot.lane.b32.xlu0 %v1024, 64
  %v1044 = vpop.permute.xlu0 %1043
  %v1047 = vsel %vm465, %v1042, %v912
  %v1048 = vsel %vm466, %v1044, %v913
  %v1049 = vsel %vm465, %v1035, 0.0
  %v1050 = vsel %vm466, %v1036, 0.0
  %v1051 = vadd.f32 %v916, %v1049
  %v1052 = vadd.f32 %v917, %v1050
  %v1053 = vpack.c.bf16 %v1038, %v1037
  %v1055 = vsel %vm523, %v1053, 0
  %1057 = vmatprep.subr.bf16.mxu0 0
  %1058 = vmatpush1.bf16.msra.mxu0 0
  %1059 = vmatprep.subr.bf16.mxu0 0
  %1060 = vmatpush1.bf16.msra.mxu0 0
  %1061 = vmatprep.subr.bf16.mxu0 0
  %1062 = vmatpush1.bf16.msra.mxu0 0
  %1063 = vmatprep.subr.bf16.mxu0 0
  %1064 = vmatpush1.bf16.msra.mxu0 0
  %1065 = vmatprep.subr.bf16.mxu0 %v514
  %1066 = vmatpush1.bf16.msra.mxu0 %v513
  %1067 = vmatprep.subr.bf16.mxu0 %v512
  %1068 = vmatpush1.bf16.msra.mxu0 %v511
  %1069 = vmatprep.subr.bf16.mxu0 %v510
  %1070 = vmatpush1.bf16.msra.mxu0 %v509
  %1071 = vmatprep.subr.bf16.mxu0 %v508
  %1072 = vmatpush1.bf16.msra.mxu0 %v507
  %1073 = vmatprep.subr.bf16.mxu0 0
  %1074 = vmatpush2.bf16.msra.mxu0 0
  %1075 = vmatprep.subr.bf16.mxu0 0
  %1076 = vmatpush2.bf16.msra.mxu0 0
  %1077 = vmatprep.subr.bf16.mxu0 0
  %1078 = vmatpush2.bf16.msra.mxu0 0
  %1079 = vmatprep.subr.bf16.mxu0 0
  %1080 = vmatpush2.bf16.msra.mxu0 0
  %1081 = vmatprep.subr.bf16.mxu0 0
  %1082 = vmatpush2.bf16.msra.mxu0 0
  %1083 = vmatprep.subr.bf16.mxu0 0
  %1084 = vmatpush2.bf16.msra.mxu0 0
  %1085 = vmatprep.subr.bf16.mxu0 0
  %1086 = vmatpush2.bf16.msra.mxu0 0
  %1087 = vmatprep.subr.bf16.mxu0 0
  %1088 = vmatpush2.bf16.msra.mxu0 0
  %1089 = vmatprep.mubr.bf16.mxu0 0
  %1090 = vmatmul.mubr.bf16.gmra.mxu0 %v1055
  %v1091 = vpop.f32.mrf.mxu0
  %v1092 = vadd.f32 0.0, %v1091
  %v1093 = vpop.f32.mrf.mxu0
  %v1094 = vadd.f32 0.0, %v1093
  %v1095 = vpop.f32.mrf.mxu0
  %v1096 = vadd.f32 0.0, %v1095
  %v1097 = vpop.f32.mrf.mxu0
  %v1098 = vadd.f32 0.0, %v1097
  %1099 = vdwg.mxu0
  %v1100 = vadd.f32 %v405, %v1092
  %v1101 = vadd.f32 %v407, %v1094
  %v1102 = vadd.f32 %v409, %v1096
  %v1103 = vadd.f32 %v411, %v1098
  %v1104 = vxor.u32 %v1100, 2147483648
  %v1105 = vxor.u32 %v1101, 2147483648
  %v1106 = vxor.u32 %v1102, 2147483648
  %v1107 = vxor.u32 %v1103, 2147483648
  %v1108 = vmul.f32 %v1104, 1.442695
  %v1109 = vpow.pop %v1108
  %v1110 = vmul.f32 %v1105, 1.442695
  %v1111 = vpow.pop %v1110
  %v1112 = vmul.f32 %v1106, 1.442695
  %v1113 = vpow.pop %v1112
  %v1114 = vmul.f32 %v1107, 1.442695
  %v1115 = vpow.pop %v1114
  %v1116 = vadd.f32 %v1109, 1.0
  %v1117 = vadd.f32 %v1111, 1.0
  %v1118 = vadd.f32 %v1113, 1.0
  %v1119 = vadd.f32 %v1115, 1.0
  %v1120 = vrcp.pop %v1116
  %v1121 = vmul.f32 1.0, %v1120
  %v1122 = vrcp.pop %v1117
  %v1123 = vmul.f32 1.0, %v1122
  %v1124 = vrcp.pop %v1118
  %v1125 = vmul.f32 1.0, %v1124
  %v1126 = vrcp.pop %v1119
  %v1127 = vmul.f32 1.0, %v1126
  %v1128 = vtanh.pop %v1101
  %v1129 = vtanh.pop %v1103
  %1132 = vrot.lane.b32.xlu0 %v1047, 64
  %v1133 = vpop.permute.xlu0 %1132
  %1134 = vrot.lane.b32.xlu0 %v1048, 64
  %v1135 = vpop.permute.xlu0 %1134
  %v1138 = vmul.f32 %v1121, %v1133
  %v1139 = vmul.f32 %v1125, %v1135
  %1142 = vrot.lane.b32.xlu0 %v1128, 64
  %v1143 = vpop.permute.xlu0 %1142
  %1144 = vrot.lane.b32.xlu0 %v1129, 64
  %v1145 = vpop.permute.xlu0 %1144
  %v1148 = vmul.f32 %v1121, %v1143
  %v1149 = vmul.f32 %v1125, %v1145
  %1152 = vrot.lane.b32.xlu0 %v1148, 64
  %v1153 = vpop.permute.xlu0 %1152
  %1154 = vrot.lane.b32.xlu0 %v1149, 64
  %v1155 = vpop.permute.xlu0 %1154
  %v1158 = vadd.f32 %v1138, %v1153
  %v1159 = vadd.f32 %v1139, %v1155
  %v1160 = vtanh.pop %v1158
  %v1161 = vtanh.pop %v1159
  %1164 = vrot.lane.b32.xlu0 %v1160, 64
  %v1165 = vpop.permute.xlu0 %1164
  %1166 = vrot.lane.b32.xlu0 %v1161, 64
  %v1167 = vpop.permute.xlu0 %1166
  %v1170 = vmul.f32 %v1123, %v1165
  %v1171 = vmul.f32 %v1127, %v1167
  %v1172 = vsel %vm467, %v1170, %v1037
  %v1173 = vsel %vm468, %v1171, %v1038
  %1176 = vrot.lane.b32.xlu0 %v1158, 64
  %v1177 = vpop.permute.xlu0 %1176
  %1178 = vrot.lane.b32.xlu0 %v1159, 64
  %v1179 = vpop.permute.xlu0 %1178
  %v1182 = vsel %vm467, %v1177, %v1047
  %v1183 = vsel %vm468, %v1179, %v1048
  %v1184 = vsel %vm467, %v1170, 0.0
  %v1185 = vsel %vm468, %v1171, 0.0
  %v1186 = vadd.f32 %v1051, %v1184
  %v1187 = vadd.f32 %v1052, %v1185
  %v1188 = vpack.c.bf16 %v1173, %v1172
  %v1190 = vsel %vm523, %v1188, 0
  %1192 = vmatprep.subr.bf16.mxu0 0
  %1193 = vmatpush1.bf16.msra.mxu0 0
  %1194 = vmatprep.subr.bf16.mxu0 0
  %1195 = vmatpush1.bf16.msra.mxu0 0
  %1196 = vmatprep.subr.bf16.mxu0 0
  %1197 = vmatpush1.bf16.msra.mxu0 0
  %1198 = vmatprep.subr.bf16.mxu0 0
  %1199 = vmatpush1.bf16.msra.mxu0 0
  %1200 = vmatprep.subr.bf16.mxu0 %v514
  %1201 = vmatpush1.bf16.msra.mxu0 %v513
  %1202 = vmatprep.subr.bf16.mxu0 %v512
  %1203 = vmatpush1.bf16.msra.mxu0 %v511
  %1204 = vmatprep.subr.bf16.mxu0 %v510
  %1205 = vmatpush1.bf16.msra.mxu0 %v509
  %1206 = vmatprep.subr.bf16.mxu0 %v508
  %1207 = vmatpush1.bf16.msra.mxu0 %v507
  %1208 = vmatprep.subr.bf16.mxu0 0
  %1209 = vmatpush2.bf16.msra.mxu0 0
  %1210 = vmatprep.subr.bf16.mxu0 0
  %1211 = vmatpush2.bf16.msra.mxu0 0
  %1212 = vmatprep.subr.bf16.mxu0 0
  %1213 = vmatpush2.bf16.msra.mxu0 0
  %1214 = vmatprep.subr.bf16.mxu0 0
  %1215 = vmatpush2.bf16.msra.mxu0 0
  %1216 = vmatprep.subr.bf16.mxu0 0
  %1217 = vmatpush2.bf16.msra.mxu0 0
  %1218 = vmatprep.subr.bf16.mxu0 0
  %1219 = vmatpush2.bf16.msra.mxu0 0
  %1220 = vmatprep.subr.bf16.mxu0 0
  %1221 = vmatpush2.bf16.msra.mxu0 0
  %1222 = vmatprep.subr.bf16.mxu0 0
  %1223 = vmatpush2.bf16.msra.mxu0 0
  %1224 = vmatprep.mubr.bf16.mxu0 0
  %1225 = vmatmul.mubr.bf16.gmra.mxu0 %v1190
  %v1226 = vpop.f32.mrf.mxu0
  %v1227 = vadd.f32 0.0, %v1226
  %v1228 = vpop.f32.mrf.mxu0
  %v1229 = vadd.f32 0.0, %v1228
  %v1230 = vpop.f32.mrf.mxu0
  %v1231 = vadd.f32 0.0, %v1230
  %v1232 = vpop.f32.mrf.mxu0
  %v1233 = vadd.f32 0.0, %v1232
  %1234 = vdwg.mxu0
  %v1235 = vadd.f32 %v415, %v1227
  %v1236 = vadd.f32 %v417, %v1229
  %v1237 = vadd.f32 %v419, %v1231
  %v1238 = vadd.f32 %v421, %v1233
  %v1239 = vxor.u32 %v1235, 2147483648
  %v1240 = vxor.u32 %v1236, 2147483648
  %v1241 = vxor.u32 %v1237, 2147483648
  %v1242 = vxor.u32 %v1238, 2147483648
  %v1243 = vmul.f32 %v1239, 1.442695
  %v1244 = vpow.pop %v1243
  %v1245 = vmul.f32 %v1240, 1.442695
  %v1246 = vpow.pop %v1245
  %v1247 = vmul.f32 %v1241, 1.442695
  %v1248 = vpow.pop %v1247
  %v1249 = vmul.f32 %v1242, 1.442695
  %v1250 = vpow.pop %v1249
  %v1251 = vadd.f32 %v1244, 1.0
  %v1252 = vadd.f32 %v1246, 1.0
  %v1253 = vadd.f32 %v1248, 1.0
  %v1254 = vadd.f32 %v1250, 1.0
  %v1255 = vrcp.pop %v1251
  %v1256 = vmul.f32 1.0, %v1255
  %v1257 = vrcp.pop %v1252
  %v1258 = vmul.f32 1.0, %v1257
  %v1259 = vrcp.pop %v1253
  %v1260 = vmul.f32 1.0, %v1259
  %v1261 = vrcp.pop %v1254
  %v1262 = vmul.f32 1.0, %v1261
  %v1263 = vtanh.pop %v1236
  %v1264 = vtanh.pop %v1238
  %1267 = vrot.lane.b32.xlu0 %v1182, 64
  %v1268 = vpop.permute.xlu0 %1267
  %1269 = vrot.lane.b32.xlu0 %v1183, 64
  %v1270 = vpop.permute.xlu0 %1269
  %v1273 = vmul.f32 %v1256, %v1268
  %v1274 = vmul.f32 %v1260, %v1270
  %1277 = vrot.lane.b32.xlu0 %v1263, 64
  %v1278 = vpop.permute.xlu0 %1277
  %1279 = vrot.lane.b32.xlu0 %v1264, 64
  %v1280 = vpop.permute.xlu0 %1279
  %v1283 = vmul.f32 %v1256, %v1278
  %v1284 = vmul.f32 %v1260, %v1280
  %1287 = vrot.lane.b32.xlu0 %v1283, 64
  %v1288 = vpop.permute.xlu0 %1287
  %1289 = vrot.lane.b32.xlu0 %v1284, 64
  %v1290 = vpop.permute.xlu0 %1289
  %v1293 = vadd.f32 %v1273, %v1288
  %v1294 = vadd.f32 %v1274, %v1290
  %v1295 = vtanh.pop %v1293
  %v1296 = vtanh.pop %v1294
  %1299 = vrot.lane.b32.xlu0 %v1295, 64
  %v1300 = vpop.permute.xlu0 %1299
  %1301 = vrot.lane.b32.xlu0 %v1296, 64
  %v1302 = vpop.permute.xlu0 %1301
  %v1305 = vmul.f32 %v1258, %v1300
  %v1306 = vmul.f32 %v1262, %v1302
  %v1307 = vsel %vm469, %v1305, %v1172
  %v1308 = vsel %vm470, %v1306, %v1173
  %1311 = vrot.lane.b32.xlu0 %v1293, 64
  %v1312 = vpop.permute.xlu0 %1311
  %1313 = vrot.lane.b32.xlu0 %v1294, 64
  %v1314 = vpop.permute.xlu0 %1313
  %v1317 = vsel %vm469, %v1312, %v1182
  %v1318 = vsel %vm470, %v1314, %v1183
  %v1319 = vsel %vm469, %v1305, 0.0
  %v1320 = vsel %vm470, %v1306, 0.0
  %v1321 = vadd.f32 %v1186, %v1319
  %v1322 = vadd.f32 %v1187, %v1320
  %v1323 = vpack.c.bf16 %v1308, %v1307
  %v1325 = vsel %vm523, %v1323, 0
  %1327 = vmatprep.subr.bf16.mxu0 0
  %1328 = vmatpush1.bf16.msra.mxu0 0
  %1329 = vmatprep.subr.bf16.mxu0 0
  %1330 = vmatpush1.bf16.msra.mxu0 0
  %1331 = vmatprep.subr.bf16.mxu0 0
  %1332 = vmatpush1.bf16.msra.mxu0 0
  %1333 = vmatprep.subr.bf16.mxu0 0
  %1334 = vmatpush1.bf16.msra.mxu0 0
  %1335 = vmatprep.subr.bf16.mxu0 %v514
  %1336 = vmatpush1.bf16.msra.mxu0 %v513
  %1337 = vmatprep.subr.bf16.mxu0 %v512
  %1338 = vmatpush1.bf16.msra.mxu0 %v511
  %1339 = vmatprep.subr.bf16.mxu0 %v510
  %1340 = vmatpush1.bf16.msra.mxu0 %v509
  %1341 = vmatprep.subr.bf16.mxu0 %v508
  %1342 = vmatpush1.bf16.msra.mxu0 %v507
  %1343 = vmatprep.subr.bf16.mxu0 0
  %1344 = vmatpush2.bf16.msra.mxu0 0
  %1345 = vmatprep.subr.bf16.mxu0 0
  %1346 = vmatpush2.bf16.msra.mxu0 0
  %1347 = vmatprep.subr.bf16.mxu0 0
  %1348 = vmatpush2.bf16.msra.mxu0 0
  %1349 = vmatprep.subr.bf16.mxu0 0
  %1350 = vmatpush2.bf16.msra.mxu0 0
  %1351 = vmatprep.subr.bf16.mxu0 0
  %1352 = vmatpush2.bf16.msra.mxu0 0
  %1353 = vmatprep.subr.bf16.mxu0 0
  %1354 = vmatpush2.bf16.msra.mxu0 0
  %1355 = vmatprep.subr.bf16.mxu0 0
  %1356 = vmatpush2.bf16.msra.mxu0 0
  %1357 = vmatprep.subr.bf16.mxu0 0
  %1358 = vmatpush2.bf16.msra.mxu0 0
  %1359 = vmatprep.mubr.bf16.mxu0 0
  %1360 = vmatmul.mubr.bf16.gmra.mxu0 %v1325
  %v1361 = vpop.f32.mrf.mxu0
  %v1362 = vadd.f32 0.0, %v1361
  %v1363 = vpop.f32.mrf.mxu0
  %v1364 = vadd.f32 0.0, %v1363
  %v1365 = vpop.f32.mrf.mxu0
  %v1366 = vadd.f32 0.0, %v1365
  %v1367 = vpop.f32.mrf.mxu0
  %v1368 = vadd.f32 0.0, %v1367
  %1369 = vdwg.mxu0
  %v1370 = vadd.f32 %v425, %v1362
  %v1371 = vadd.f32 %v427, %v1364
  %v1372 = vadd.f32 %v429, %v1366
  %v1373 = vadd.f32 %v431, %v1368
  %v1374 = vxor.u32 %v1370, 2147483648
  %v1375 = vxor.u32 %v1371, 2147483648
  %v1376 = vxor.u32 %v1372, 2147483648
  %v1377 = vxor.u32 %v1373, 2147483648
  %v1378 = vmul.f32 %v1374, 1.442695
  %v1379 = vpow.pop %v1378
  %v1380 = vmul.f32 %v1375, 1.442695
  %v1381 = vpow.pop %v1380
  %v1382 = vmul.f32 %v1376, 1.442695
  %v1383 = vpow.pop %v1382
  %v1384 = vmul.f32 %v1377, 1.442695
  %v1385 = vpow.pop %v1384
  %v1386 = vadd.f32 %v1379, 1.0
  %v1387 = vadd.f32 %v1381, 1.0
  %v1388 = vadd.f32 %v1383, 1.0
  %v1389 = vadd.f32 %v1385, 1.0
  %v1390 = vrcp.pop %v1386
  %v1391 = vmul.f32 1.0, %v1390
  %v1392 = vrcp.pop %v1387
  %v1393 = vmul.f32 1.0, %v1392
  %v1394 = vrcp.pop %v1388
  %v1395 = vmul.f32 1.0, %v1394
  %v1396 = vrcp.pop %v1389
  %v1397 = vmul.f32 1.0, %v1396
  %v1398 = vtanh.pop %v1371
  %v1399 = vtanh.pop %v1373
  %1402 = vrot.lane.b32.xlu0 %v1317, 64
  %v1403 = vpop.permute.xlu0 %1402
  %1404 = vrot.lane.b32.xlu0 %v1318, 64
  %v1405 = vpop.permute.xlu0 %1404
  %v1408 = vmul.f32 %v1391, %v1403
  %v1409 = vmul.f32 %v1395, %v1405
  %1412 = vrot.lane.b32.xlu0 %v1398, 64
  %v1413 = vpop.permute.xlu0 %1412
  %1414 = vrot.lane.b32.xlu0 %v1399, 64
  %v1415 = vpop.permute.xlu0 %1414
  %v1418 = vmul.f32 %v1391, %v1413
  %v1419 = vmul.f32 %v1395, %v1415
  %1422 = vrot.lane.b32.xlu0 %v1418, 64
  %v1423 = vpop.permute.xlu0 %1422
  %1424 = vrot.lane.b32.xlu0 %v1419, 64
  %v1425 = vpop.permute.xlu0 %1424
  %v1428 = vadd.f32 %v1408, %v1423
  %v1429 = vadd.f32 %v1409, %v1425
  %v1430 = vtanh.pop %v1428
  %v1431 = vtanh.pop %v1429
  %1434 = vrot.lane.b32.xlu0 %v1430, 64
  %v1435 = vpop.permute.xlu0 %1434
  %1436 = vrot.lane.b32.xlu0 %v1431, 64
  %v1437 = vpop.permute.xlu0 %1436
  %v1440 = vmul.f32 %v1393, %v1435
  %v1441 = vmul.f32 %v1397, %v1437
  %v1442 = vsel %vm471, %v1440, %v1307
  %v1443 = vsel %vm472, %v1441, %v1308
  %1446 = vrot.lane.b32.xlu0 %v1428, 64
  %v1447 = vpop.permute.xlu0 %1446
  %1448 = vrot.lane.b32.xlu0 %v1429, 64
  %v1449 = vpop.permute.xlu0 %1448
  %v1452 = vsel %vm471, %v1447, %v1317
  %v1453 = vsel %vm472, %v1449, %v1318
  %v1454 = vsel %vm471, %v1440, 0.0
  %v1455 = vsel %vm472, %v1441, 0.0
  %v1456 = vadd.f32 %v1321, %v1454
  %v1457 = vadd.f32 %v1322, %v1455
  %v1458 = vpack.c.bf16 %v1443, %v1442
  %v1460 = vsel %vm523, %v1458, 0
  %1462 = vmatprep.subr.bf16.mxu0 0
  %1463 = vmatpush1.bf16.msra.mxu0 0
  %1464 = vmatprep.subr.bf16.mxu0 0
  %1465 = vmatpush1.bf16.msra.mxu0 0
  %1466 = vmatprep.subr.bf16.mxu0 0
  %1467 = vmatpush1.bf16.msra.mxu0 0
  %1468 = vmatprep.subr.bf16.mxu0 0
  %1469 = vmatpush1.bf16.msra.mxu0 0
  %1470 = vmatprep.subr.bf16.mxu0 %v514
  %1471 = vmatpush1.bf16.msra.mxu0 %v513
  %1472 = vmatprep.subr.bf16.mxu0 %v512
  %1473 = vmatpush1.bf16.msra.mxu0 %v511
  %1474 = vmatprep.subr.bf16.mxu0 %v510
  %1475 = vmatpush1.bf16.msra.mxu0 %v509
  %1476 = vmatprep.subr.bf16.mxu0 %v508
  %1477 = vmatpush1.bf16.msra.mxu0 %v507
  %1478 = vmatprep.subr.bf16.mxu0 0
  %1479 = vmatpush2.bf16.msra.mxu0 0
  %1480 = vmatprep.subr.bf16.mxu0 0
  %1481 = vmatpush2.bf16.msra.mxu0 0
  %1482 = vmatprep.subr.bf16.mxu0 0
  %1483 = vmatpush2.bf16.msra.mxu0 0
  %1484 = vmatprep.subr.bf16.mxu0 0
  %1485 = vmatpush2.bf16.msra.mxu0 0
  %1486 = vmatprep.subr.bf16.mxu0 0
  %1487 = vmatpush2.bf16.msra.mxu0 0
  %1488 = vmatprep.subr.bf16.mxu0 0
  %1489 = vmatpush2.bf16.msra.mxu0 0
  %1490 = vmatprep.subr.bf16.mxu0 0
  %1491 = vmatpush2.bf16.msra.mxu0 0
  %1492 = vmatprep.subr.bf16.mxu0 0
  %1493 = vmatpush2.bf16.msra.mxu0 0
  %1494 = vmatprep.mubr.bf16.mxu0 0
  %1495 = vmatmul.mubr.bf16.gmra.mxu0 %v1460
  %v1496 = vpop.f32.mrf.mxu0
  %v1497 = vadd.f32 0.0, %v1496
  %v1498 = vpop.f32.mrf.mxu0
  %v1499 = vadd.f32 0.0, %v1498
  %v1500 = vpop.f32.mrf.mxu0
  %v1501 = vadd.f32 0.0, %v1500
  %v1502 = vpop.f32.mrf.mxu0
  %v1503 = vadd.f32 0.0, %v1502
  %1504 = vdwg.mxu0
  %v1505 = vadd.f32 %v435, %v1497
  %v1506 = vadd.f32 %v437, %v1499
  %v1507 = vadd.f32 %v439, %v1501
  %v1508 = vadd.f32 %v441, %v1503
  %v1509 = vxor.u32 %v1505, 2147483648
  %v1510 = vxor.u32 %v1506, 2147483648
  %v1511 = vxor.u32 %v1507, 2147483648
  %v1512 = vxor.u32 %v1508, 2147483648
  %v1513 = vmul.f32 %v1509, 1.442695
  %v1514 = vpow.pop %v1513
  %v1515 = vmul.f32 %v1510, 1.442695
  %v1516 = vpow.pop %v1515
  %v1517 = vmul.f32 %v1511, 1.442695
  %v1518 = vpow.pop %v1517
  %v1519 = vmul.f32 %v1512, 1.442695
  %v1520 = vpow.pop %v1519
  %v1521 = vadd.f32 %v1514, 1.0
  %v1522 = vadd.f32 %v1516, 1.0
  %v1523 = vadd.f32 %v1518, 1.0
  %v1524 = vadd.f32 %v1520, 1.0
  %v1525 = vrcp.pop %v1521
  %v1526 = vmul.f32 1.0, %v1525
  %v1527 = vrcp.pop %v1522
  %v1528 = vmul.f32 1.0, %v1527
  %v1529 = vrcp.pop %v1523
  %v1530 = vmul.f32 1.0, %v1529
  %v1531 = vrcp.pop %v1524
  %v1532 = vmul.f32 1.0, %v1531
  %v1533 = vtanh.pop %v1506
  %v1534 = vtanh.pop %v1508
  %1537 = vrot.lane.b32.xlu0 %v1452, 64
  %v1538 = vpop.permute.xlu0 %1537
  %1539 = vrot.lane.b32.xlu0 %v1453, 64
  %v1540 = vpop.permute.xlu0 %1539
  %v1543 = vmul.f32 %v1526, %v1538
  %v1544 = vmul.f32 %v1530, %v1540
  %1547 = vrot.lane.b32.xlu0 %v1533, 64
  %v1548 = vpop.permute.xlu0 %1547
  %1549 = vrot.lane.b32.xlu0 %v1534, 64
  %v1550 = vpop.permute.xlu0 %1549
  %v1553 = vmul.f32 %v1526, %v1548
  %v1554 = vmul.f32 %v1530, %v1550
  %1557 = vrot.lane.b32.xlu0 %v1553, 64
  %v1558 = vpop.permute.xlu0 %1557
  %1559 = vrot.lane.b32.xlu0 %v1554, 64
  %v1560 = vpop.permute.xlu0 %1559
  %v1563 = vadd.f32 %v1543, %v1558
  %v1564 = vadd.f32 %v1544, %v1560
  %v1565 = vtanh.pop %v1563
  %v1566 = vtanh.pop %v1564
  %1569 = vrot.lane.b32.xlu0 %v1565, 64
  %v1570 = vpop.permute.xlu0 %1569
  %1571 = vrot.lane.b32.xlu0 %v1566, 64
  %v1572 = vpop.permute.xlu0 %1571
  %v1575 = vmul.f32 %v1528, %v1570
  %v1576 = vmul.f32 %v1532, %v1572
  %v1577 = vsel %vm473, %v1575, 0.0
  %v1578 = vsel %vm474, %v1576, 0.0
  %v1579 = vadd.f32 %v1456, %v1577
  %v1580 = vadd.f32 %v1457, %v1578
  %v1581 = vld [vmem:[%s1] sm:$0xff]
  %v1582 = vld [vmem:[%s1 + $0x8] sm:$0xff]
  %v1583 = vcvt.s32.f32 %v1581
  %v1584 = vcvt.s32.f32 %v1582
  %v1585 = vmax.f32 %v1583, 1.0
  %v1586 = vmax.f32 %v1584, 1.0
  %v1587 = vrcp.pop %v1585
  %v1588 = vrcp.pop %v1586
  %1590 = vset.pattern.permute.xlu0 0
  %1591 = vperm.xlu0 %1590, %v1587
  %v1592 = vpop.permute.xlu0 %1591
  %1595 = vset.pattern.permute.xlu0 0
  %1596 = vperm.xlu0 %1595, %v1588
  %v1597 = vpop.permute.xlu0 %1596
  %v1599 = vmul.f32 %v1579, %v1592
  %v1600 = vmul.f32 %v1580, %v1597
  %v1601 = vpack.c.bf16 %v1600, %v1599
  %v1602 = vld [vmem:[%s6] sm:$0xf]
  %v1603 = vld [vmem:[%s6 + $0x4] sm:$0xf]
  %v1604 = vld [vmem:[%s6 + $0x8] sm:$0xf]
  %v1605 = vld [vmem:[%s6 + $0xc] sm:$0xf]
  %v1606 = vld [vmem:[%s6 + $0x10] sm:$0xf]
  %v1607 = vld [vmem:[%s6 + $0x14] sm:$0xf]
  %v1608 = vld [vmem:[%s6 + $0x18] sm:$0xf]
  %v1609 = vld [vmem:[%s6 + $0x1c] sm:$0xf]
  %v1610 = vld [vmem:[%s7] sm:$0x1]
  %v1612 = vlaneseq
  %v1613 = vshrl.u32 %v1612, 7
  %v1614 = vsub.s32 0, %v1613
  %v1615 = vrot.slane %v1610, %v1614
  %v1625 = vunpack.c.l.b16 %v1602
  %v1626 = vunpack.c.l.b16 %v1603
  %v1627 = vunpack.c.l.b16 %v1604
  %v1628 = vunpack.c.l.b16 %v1605
  %v1629 = vunpack.c.l.b16 %v1606
  %v1630 = vunpack.c.l.b16 %v1607
  %v1631 = vunpack.c.l.b16 %v1608
  %v1632 = vunpack.c.l.b16 %v1609
  %v1633 = vpack.c.b16 %v1626, %v1625
  %v1634 = vpack.c.b16 %v1628, %v1627
  %v1635 = vpack.c.b16 %v1630, %v1629
  %v1636 = vpack.c.b16 %v1632, %v1631
  %v1642 = vsel %vm523, %v1601, 0
  %1644 = vmatprep.subr.bf16.mxu0 0
  %1645 = vmatpush1.bf16.msra.mxu0 0
  %1646 = vmatprep.subr.bf16.mxu0 0
  %1647 = vmatpush1.bf16.msra.mxu0 0
  %1648 = vmatprep.subr.bf16.mxu0 0
  %1649 = vmatpush1.bf16.msra.mxu0 0
  %1650 = vmatprep.subr.bf16.mxu0 0
  %1651 = vmatpush1.bf16.msra.mxu0 0
  %1652 = vmatprep.subr.bf16.mxu0 0
  %1653 = vmatpush1.bf16.msra.mxu0 %v1636
  %1654 = vmatprep.subr.bf16.mxu0 0
  %1655 = vmatpush1.bf16.msra.mxu0 %v1635
  %1656 = vmatprep.subr.bf16.mxu0 0
  %1657 = vmatpush1.bf16.msra.mxu0 %v1634
  %1658 = vmatprep.subr.bf16.mxu0 0
  %1659 = vmatpush1.bf16.msra.mxu0 %v1633
  %1660 = vmatprep.subr.bf16.mxu0 0
  %1661 = vmatpush2.bf16.msra.mxu0 0
  %1662 = vmatprep.subr.bf16.mxu0 0
  %1663 = vmatpush2.bf16.msra.mxu0 0
  %1664 = vmatprep.subr.bf16.mxu0 0
  %1665 = vmatpush2.bf16.msra.mxu0 0
  %1666 = vmatprep.subr.bf16.mxu0 0
  %1667 = vmatpush2.bf16.msra.mxu0 0
  %1668 = vmatprep.subr.bf16.mxu0 0
  %1669 = vmatpush2.bf16.msra.mxu0 0
  %1670 = vmatprep.subr.bf16.mxu0 0
  %1671 = vmatpush2.bf16.msra.mxu0 0
  %1672 = vmatprep.subr.bf16.mxu0 0
  %1673 = vmatpush2.bf16.msra.mxu0 0
  %1674 = vmatprep.subr.bf16.mxu0 0
  %1675 = vmatpush2.bf16.msra.mxu0 0
  %1676 = vmatprep.mubr.bf16.mxu0 0
  %1677 = vmatmul.mubr.bf16.gmra.mxu0 %v1642
  %v1678 = vpop.f32.mrf.mxu0
  %v1679 = vadd.f32 %v1615, %v1678
  %v1680 = vpop.f32.mrf.mxu0
  %v1681 = vpop.f32.mrf.mxu0
  %v1682 = vadd.f32 %v1615, %v1681
  %v1683 = vpop.f32.mrf.mxu0
  %1684 = vdwg.mxu0
  %1685 = vst [vmem:[%s8] sm:$0xff] %v1679
  %1686 = vst [vmem:[%s8 + $0x8] sm:$0xff] %v1682
  // Predicated region
  $region34: #{textrnn_forward.1} parent=0 // pred_check
    _
  $region35: #{textrnn_forward.1} parent=0 // pred_check_branch
    %1688 = sbr.rel (0) target = $region37
  $region36: #{textrnn_forward.1} parent=0 // pred_region
    _
  $region37: #{textrnn_forward.1} parent=0 // pred_fallthru
    _
  // Predicated region
  $region38: #{textrnn_forward.1} parent=0 // pred_check
    _
  $region39: #{textrnn_forward.1} parent=0 // pred_check_branch
    %1690 = sbr.rel (0) target = $region41
  $region40: #{textrnn_forward.1} parent=0 // pred_region
    _
  $region41: #{textrnn_forward.1} parent=0 // pred_fallthru
    _

</llo_original>
